<compile_context>
chip_gen: v7x
topology: tpu7x:2x2x1
jax: 0.10.0
libtpu: 0.0.40
codegen_flags: <defaults>
</compile_context>

<pallas_src>
import jax
import jax.numpy as jnp
from jax.experimental import pallas as pl
from jax.experimental.pallas import tpu as pltpu


# ==========================================================================
# Weight repacking (done once, outside the jitted forward)
# ==========================================================================
def _conv_band(w_kkio, W):
    """(3, 3, Cin, Cout) conv weights -> (3, W*Cin, W*Cout) banded matrices.

    In the lane-dense (H, W*C) layout, a 3x3 conv (stride 1, pad 1) is
        out[h, :] = sum_kh  x_hpad[h + kh, :] @ band[kh]
    band[kh][(w+kw-1)*Cin + ci, w*Cout + co] = w[kh, kw, ci, co]  (valid w+kw-1),
    which also encodes the zero padding along W.
    """
    KH, KW, Cin, Cout = w_kkio.shape
    kw = jnp.arange(KW)[:, None, None]
    src = jnp.arange(W)[None, :, None]
    dst = jnp.arange(W)[None, None, :]
    sel = (src == dst + kw - 1).astype(w_kkio.dtype)        # (KW, W, W)
    band = jnp.einsum("hkio,ksw->hsiwo", w_kkio, sel)       # (KH, W, Cin, W, Cout)
    return band.reshape(KH, W * Cin, W * Cout)


def prepare_params(params, H, W, vpad=128):
    """One-time repack of PyTorch-style weights into kernel-friendly layouts."""
    Cf = params["conv1_w"].shape[3]
    E = params["proj_w"].shape[1]
    V = params["wout"].shape[1]
    cdt = jnp.bfloat16            # MXU weight dtype (f32 accumulation in-kernel)

    return {
        # banded conv weights + lane-dense (tiled over W) biases
        "wb1": _conv_band(params["conv1_w"], W).astype(cdt),
        "b1t": jnp.tile(params["conv1_b"].reshape(-1), W).reshape(1, W * Cf),
        "wb2": _conv_band(params["conv2_w"], W).astype(cdt),
        "b2t": jnp.tile(params["conv2_b"].reshape(-1), W).reshape(1, W * Cf),
        # fused avg-pool + projection matrix (includes the 1/(H*W) scale)
        "pool_proj_w": (jnp.tile(params["proj_w"], (W, 1)) / (H * W)).astype(cdt),
        "proj_b": params["proj_b"].reshape(1, E),
        # decoder
        "emb": params["emb"],
        "wih": params["wih"].astype(cdt),
        "whh": params["whh"].astype(cdt),
        "b": (params["bih"] + params["bhh"]).reshape(1, -1),   # combined gate bias
        "wout_p": jnp.pad(params["wout"], ((0, 0), (0, vpad - V))).astype(cdt),
        "bout_p": jnp.pad(params["bout"].reshape(1, -1), ((0, 0), (0, vpad - V))),
    }


# ==========================================================================
# Fused CNN encoder kernel: conv3x3+ReLU -> conv3x3+ReLU -> avgpool -> proj
# ==========================================================================
def cnn_forward(xp, wb1, b1, wb2, b2, pw, pb):
    """xp: (N, H+2, W*Cin) H-padded image.  Returns (feat (N,H,W*Cf), emb (N,1,E))."""
    N, Hp, WC = xp.shape
    H = Hp - 2
    WCf = wb1.shape[2]            # lane-dense feature width = W * Cf (= 128 here)
    E = pw.shape[1]
    cdt = wb1.dtype               # bf16 matmul operand dtype

    def kernel(x_ref, wb1_ref, b1_ref, wb2_ref, b2_ref, pw_ref, pb_ref,
               feat_ref, emb_ref, f1p_sc):
        x = x_ref[0]                                            # (Hp, W*Cin)

        # conv1: 3 banded MXU matmuls + bias + ReLU
        acc1 = jnp.zeros((H, WCf), jnp.float32) + b1_ref[...]
        for kh in range(3):
            acc1 = acc1 + jnp.dot(x[kh:kh + H, :].astype(cdt), wb1_ref[kh],
                                  preferred_element_type=jnp.float32)
        f1 = jnp.maximum(acc1, 0.0)

        # zero-pad conv1 output along H into scratch (W padding lives in wb2)
        f1p_sc[0:1, :] = jnp.zeros((1, WCf), jnp.float32)
        f1p_sc[Hp - 1:Hp, :] = jnp.zeros((1, WCf), jnp.float32)
        f1p_sc[1:1 + H, :] = f1
        f1p = f1p_sc[...]

        # conv2: 3 banded MXU matmuls + bias + ReLU  (hooked activation map)
        acc2 = jnp.zeros((H, WCf), jnp.float32) + b2_ref[...]
        for kh in range(3):
            acc2 = acc2 + jnp.dot(f1p[kh:kh + H, :].astype(cdt), wb2_ref[kh],
                                  preferred_element_type=jnp.float32)
        feat = jnp.maximum(acc2, 0.0)
        feat_ref[0] = feat                                      # full-lane store

        # global avg-pool + projection: one sublane reduce + one MXU matmul
        pooled = jnp.sum(feat, axis=0, keepdims=True)           # (1, W*Cf)
        emb_ref[0] = (jnp.dot(pooled.astype(cdt), pw_ref[...],
                              preferred_element_type=jnp.float32) + pb_ref[...])

    return pl.pallas_call(
        kernel,
        out_shape=(jax.ShapeDtypeStruct((N, H, WCf), jnp.float32),
                   jax.ShapeDtypeStruct((N, 1, E), jnp.float32)),
        grid=(N,),
        in_specs=[
            pl.BlockSpec((1, Hp, WC), lambda n: (n, 0, 0)),
            pl.BlockSpec((3, WC, WCf), lambda n: (0, 0, 0)),
            pl.BlockSpec((1, WCf), lambda n: (0, 0)),
            pl.BlockSpec((3, WCf, WCf), lambda n: (0, 0, 0)),
            pl.BlockSpec((1, WCf), lambda n: (0, 0)),
            pl.BlockSpec((WCf, E), lambda n: (0, 0)),
            pl.BlockSpec((1, E), lambda n: (0, 0)),
        ],
        out_specs=(pl.BlockSpec((1, H, WCf), lambda n: (n, 0, 0)),
                   pl.BlockSpec((1, 1, E), lambda n: (n, 0, 0))),
        scratch_shapes=[pltpu.VMEM((Hp, WCf), jnp.float32)],
        compiler_params=pltpu.CompilerParams(
            dimension_semantics=("parallel",)),
    )(xp, wb1, b1, wb2, b2, pw, pb)


# ==========================================================================
# LSTM decoder kernel (single launch, hoisted X@Wih, batched vocab matmul)
# ==========================================================================
def lstm_decode(seq_2d, wih, whh, b, wout_p, bout_p, *, batch):
    """seq_2d: ((T+1)*N, E) time-major rows.  Returns logits ((T+1)*N, Vp)."""
    T1N, E = seq_2d.shape
    n = batch
    t1 = T1N // n
    Hd = whh.shape[0]
    G = wih.shape[1]              # 4 * Hd
    Vp = wout_p.shape[1]          # vocab padded to 128 lanes
    cdt = wih.dtype

    def kernel(seq_ref, wih_ref, whh_ref, b_ref, wout_ref, bout_ref,
               out_ref, hs_sc):
        # hoisted input-to-hidden projection for ALL time steps: one MXU matmul
        xg = (jnp.dot(seq_ref[...].astype(cdt), wih_ref[...],
                      preferred_element_type=jnp.float32) + b_ref[...])
        whh_w = whh_ref[...]
        h = jnp.zeros((n, Hd), jnp.float32)
        c = jnp.zeros((n, Hd), jnp.float32)
        for t in range(t1):                       # static unroll over T+1 steps
            gates = xg[t * n:(t + 1) * n, :] + jnp.dot(
                h.astype(cdt), whh_w, preferred_element_type=jnp.float32)
            sig = jax.nn.sigmoid(gates)           # one pass over all 4 gates
            th = jnp.tanh(gates)
            i = sig[:, 0 * Hd:1 * Hd]             # PyTorch gate order (i, f, g, o)
            f = sig[:, 1 * Hd:2 * Hd]
            g = th[:, 2 * Hd:3 * Hd]
            o = sig[:, 3 * Hd:4 * Hd]
            c = f * c + i * g
            h = o * jnp.tanh(c)
            hs_sc[t * n:(t + 1) * n, :] = h
        # single batched vocab projection, lane-dense (Vp = 128) store
        out_ref[...] = (jnp.dot(hs_sc[...].astype(cdt), wout_ref[...],
                                preferred_element_type=jnp.float32)
                        + bout_ref[...])

    return pl.pallas_call(
        kernel,
        out_shape=jax.ShapeDtypeStruct((T1N, Vp), jnp.float32),
        grid=(1,),
        in_specs=[
            pl.BlockSpec((T1N, E), lambda i: (0, 0)),
            pl.BlockSpec((E, G), lambda i: (0, 0)),
            pl.BlockSpec((Hd, G), lambda i: (0, 0)),
            pl.BlockSpec((1, G), lambda i: (0, 0)),
            pl.BlockSpec((Hd, Vp), lambda i: (0, 0)),
            pl.BlockSpec((1, Vp), lambda i: (0, 0)),
        ],
        out_specs=pl.BlockSpec((T1N, Vp), lambda i: (0, 0)),
        scratch_shapes=[pltpu.VMEM((T1N, Hd), jnp.float32)],
        compiler_params=pltpu.CompilerParams(
            dimension_semantics=("arbitrary",)),
    )(seq_2d, wih, whh, b, wout_p, bout_p)


# ==========================================================================
# Full GradCamModel.forward equivalent
# ==========================================================================
def gradcam_forward(prep, image_nchw, caption):
    N, Cin, H, W = image_nchw.shape

    # NCHW -> lane-interleaved (N, H, W*Cin), zero-pad H by 1 on each side.
    x = jnp.transpose(image_nchw, (0, 2, 3, 1)).astype(jnp.float32)
    x = x.reshape(N, H, W * Cin)
    xp = jnp.pad(x, ((0, 0), (1, 1), (0, 0)))

    # fused conv1 -> conv2 -> avgpool -> projection (single pallas_call)
    feat, cnn_emb = cnn_forward(xp, prep["wb1"], prep["b1t"], prep["wb2"],
                                prep["b2t"], prep["pool_proj_w"], prep["proj_b"])
    Cf = feat.shape[2] // W
    selected_out = jnp.transpose(feat.reshape(N, H, W, Cf), (0, 3, 1, 2))  # NCHW
    cnn_emb = cnn_emb.reshape(N, -1)                            # (N, E)

    # caption embedding lookup (gather kept in JAX glue)
    cap_emb = jnp.take(prep["emb"], caption, axis=0)            # (N, T, E)

    # prepend image embedding, flatten to time-major rows, run LSTM decoder
    seq = jnp.concatenate([cnn_emb[:, None, :], cap_emb], axis=1)   # (N, T+1, E)
    T1 = seq.shape[1]
    seq_2d = jnp.transpose(seq, (1, 0, 2)).reshape(T1 * N, -1)      # (T1*N, E)
    logits = lstm_decode(seq_2d, prep["wih"], prep["whh"], prep["b"],
                         prep["wout_p"], prep["bout_p"], batch=N)   # (T1*N, Vp)

    V = prep["emb"].shape[0]
    lstm_out = jnp.transpose(logits.reshape(T1, N, -1)[:, :, :V], (1, 0, 2))
    return lstm_out, selected_out


if __name__ == "__main__":
    N, Cin, Himg, Wimg = 2, 3, 16, 16      # image batch / channels / spatial
    Cf, E, Hd, V, T = 8, 32, 32, 48, 8     # feat ch, embed, hidden, vocab, seq

    key = jax.random.PRNGKey(0)
    keys = jax.random.split(key, 15)

    def init(k, shape, scale):
        return scale * jax.random.normal(k, shape, jnp.float32)

    params = {
        "conv1_w": init(keys[0], (3, 3, Cin, Cf), 0.2),
        "conv1_b": init(keys[1], (1, Cf), 0.1),
        "conv2_w": init(keys[2], (3, 3, Cf, Cf), 0.2),
        "conv2_b": init(keys[3], (1, Cf), 0.1),
        "proj_w":  init(keys[4], (Cf, E), 0.2),
        "proj_b":  init(keys[5], (1, E), 0.1),
        "emb":     init(keys[6], (V, E), 0.1),
        "wih":     init(keys[7], (E, 4 * Hd), 0.1),
        "whh":     init(keys[8], (Hd, 4 * Hd), 0.1),
        "bih":     init(keys[9], (1, 4 * Hd), 0.05),
        "bhh":     init(keys[10], (1, 4 * Hd), 0.05),
        "wout":    init(keys[11], (Hd, V), 0.1),
        "bout":    init(keys[12], (1, V), 0.05),
    }

    image = jax.random.normal(keys[13], (N, Cin, Himg, Wimg), jnp.float32)
    caption = jax.random.randint(keys[14], (N, T), 0, V, dtype=jnp.int32)

    prep = prepare_params(params, Himg, Wimg)      # one-time weight repack
    fwd = jax.jit(gradcam_forward)
    lstm_out, selected_out = fwd(prep, image, caption)
    jax.block_until_ready((lstm_out, selected_out))

    assert lstm_out.shape == (N, T + 1, V)
    assert selected_out.shape == (N, Cf, Himg, Wimg)
    assert jnp.all(jnp.isfinite(lstm_out)) and jnp.all(jnp.isfinite(selected_out))
    print("KERNEL_OK")
</pallas_src>

<mosaic_0001>
module attributes {stable_mosaic.version = 11 : i64} {
  func.func @kernel(%arg0: i32, %arg1: memref<1x18x48xf32, #tpu.memory_space<vmem>>, %arg2: memref<3x48x128xbf16, #tpu.memory_space<vmem>>, %arg3: memref<1x128xf32, #tpu.memory_space<vmem>>, %arg4: memref<3x128x128xbf16, #tpu.memory_space<vmem>>, %arg5: memref<1x128xf32, #tpu.memory_space<vmem>>, %arg6: memref<128x32xbf16, #tpu.memory_space<vmem>>, %arg7: memref<1x32xf32, #tpu.memory_space<vmem>>, %arg8: memref<1x16x128xf32, #tpu.memory_space<vmem>>, %arg9: memref<1x1x32xf32, #tpu.memory_space<vmem>>, %arg10: memref<18x128xf32, #tpu.memory_space<vmem>>) attributes {dimension_semantics = [#tpu.dimension_semantics<parallel>], iteration_bounds = array<i64: 2>, scalar_prefetch = 0 : i64, scratch_operands = 1 : i64, tpu.core_type = #tpu.core_type<tc>, window_params = [{transform_indices = @transform_0, window_bounds = array<i64: 1, 18, 48>}, {pipeline_mode = #tpu.pipeline_mode<synchronous>, transform_indices = @transform_1, window_bounds = array<i64: 3, 48, 128>}, {pipeline_mode = #tpu.pipeline_mode<synchronous>, transform_indices = @transform_2, window_bounds = array<i64: 1, 128>}, {pipeline_mode = #tpu.pipeline_mode<synchronous>, transform_indices = @transform_3, window_bounds = array<i64: 3, 128, 128>}, {pipeline_mode = #tpu.pipeline_mode<synchronous>, transform_indices = @transform_4, window_bounds = array<i64: 1, 128>}, {pipeline_mode = #tpu.pipeline_mode<synchronous>, transform_indices = @transform_5, window_bounds = array<i64: 128, 32>}, {pipeline_mode = #tpu.pipeline_mode<synchronous>, transform_indices = @transform_6, window_bounds = array<i64: 1, 32>}, {transform_indices = @transform_7, window_bounds = array<i64: 1, 16, 128>}, {transform_indices = @transform_8, window_bounds = array<i64: 1, 1, 32>}]} {
    %c0 = arith.constant 0 : index
    %c0_0 = arith.constant 0 : index
    %c0_1 = arith.constant 0 : index
    %0 = vector.load %arg1[%c0, %c0_0, %c0_1] : memref<1x18x48xf32, #tpu.memory_space<vmem>>, vector<1x18x48xf32>
    %1 = vector.shape_cast %0 : vector<1x18x48xf32> to vector<18x48xf32>
    %cst = arith.constant 0.000000e+00 : f32
    %2 = vector.broadcast %cst : f32 to vector<16x128xf32>
    %c0_2 = arith.constant 0 : index
    %c0_3 = arith.constant 0 : index
    %3 = vector.load %arg3[%c0_2, %c0_3] : memref<1x128xf32, #tpu.memory_space<vmem>>, vector<1x128xf32>
    %4 = vector.broadcast %3 : vector<1x128xf32> to vector<16x128xf32>
    %5 = arith.addf %2, %4 : vector<16x128xf32>
    %6 = vector.extract_strided_slice %1 {offsets = [0, 0], sizes = [16, 48], strides = [1, 1]} : vector<18x48xf32> to vector<16x48xf32>
    %7 = arith.truncf %6 : vector<16x48xf32> to vector<16x48xbf16>
    %c0_4 = arith.constant 0 : index
    %c0_5 = arith.constant 0 : index
    %c0_6 = arith.constant 0 : index
    %8 = vector.load %arg2[%c0_4, %c0_5, %c0_6] : memref<3x48x128xbf16, #tpu.memory_space<vmem>>, vector<1x48x128xbf16>
    %9 = vector.shape_cast %8 : vector<1x48x128xbf16> to vector<48x128xbf16>
    %cst_7 = arith.constant dense<0.000000e+00> : vector<16x128xf32>
    %10 = tpu.matmul %7, %9, %cst_7 {dimension_numbers = #tpu.dot_dimension_numbers<[1], [0], [0], [1], [0, 0, 1, 1], [], []>} : vector<16x48xbf16>, vector<48x128xbf16>, vector<16x128xf32> -> vector<16x128xf32>
    %11 = arith.addf %5, %10 : vector<16x128xf32>
    %12 = vector.extract_strided_slice %1 {offsets = [1, 0], sizes = [16, 48], strides = [1, 1]} : vector<18x48xf32> to vector<16x48xf32>
    %13 = arith.truncf %12 : vector<16x48xf32> to vector<16x48xbf16>
    %c1 = arith.constant 1 : index
    %c0_8 = arith.constant 0 : index
    %c0_9 = arith.constant 0 : index
    %14 = vector.load %arg2[%c1, %c0_8, %c0_9] : memref<3x48x128xbf16, #tpu.memory_space<vmem>>, vector<1x48x128xbf16>
    %15 = vector.shape_cast %14 : vector<1x48x128xbf16> to vector<48x128xbf16>
    %cst_10 = arith.constant dense<0.000000e+00> : vector<16x128xf32>
    %16 = tpu.matmul %13, %15, %cst_10 {dimension_numbers = #tpu.dot_dimension_numbers<[1], [0], [0], [1], [0, 0, 1, 1], [], []>} : vector<16x48xbf16>, vector<48x128xbf16>, vector<16x128xf32> -> vector<16x128xf32>
    %17 = arith.addf %11, %16 : vector<16x128xf32>
    %18 = vector.extract_strided_slice %1 {offsets = [2, 0], sizes = [16, 48], strides = [1, 1]} : vector<18x48xf32> to vector<16x48xf32>
    %19 = arith.truncf %18 : vector<16x48xf32> to vector<16x48xbf16>
    %c2 = arith.constant 2 : index
    %c0_11 = arith.constant 0 : index
    %c0_12 = arith.constant 0 : index
    %20 = vector.load %arg2[%c2, %c0_11, %c0_12] : memref<3x48x128xbf16, #tpu.memory_space<vmem>>, vector<1x48x128xbf16>
    %21 = vector.shape_cast %20 : vector<1x48x128xbf16> to vector<48x128xbf16>
    %cst_13 = arith.constant dense<0.000000e+00> : vector<16x128xf32>
    %22 = tpu.matmul %19, %21, %cst_13 {dimension_numbers = #tpu.dot_dimension_numbers<[1], [0], [0], [1], [0, 0, 1, 1], [], []>} : vector<16x48xbf16>, vector<48x128xbf16>, vector<16x128xf32> -> vector<16x128xf32>
    %23 = arith.addf %17, %22 : vector<16x128xf32>
    %cst_14 = arith.constant 0.000000e+00 : f32
    %24 = vector.broadcast %cst_14 : f32 to vector<16x128xf32>
    %25 = arith.maximumf %23, %24 : vector<16x128xf32>
    %cst_15 = arith.constant 0.000000e+00 : f32
    %26 = vector.broadcast %cst_15 : f32 to vector<1x128xf32>
    %c0_16 = arith.constant 0 : index
    %c0_17 = arith.constant 0 : index
    %27 = vector.load %arg10[%c0_16, %c0_17] : memref<18x128xf32, #tpu.memory_space<vmem>>, vector<1x128xf32>
    tpu.vector_store %arg10[%c0_16, %c0_17], %26 {strides = array<i32>} : memref<18x128xf32, #tpu.memory_space<vmem>>, vector<1x128xf32>,
    %cst_18 = arith.constant 0.000000e+00 : f32
    %28 = vector.broadcast %cst_18 : f32 to vector<1x128xf32>
    %c17 = arith.constant 17 : index
    %c0_19 = arith.constant 0 : index
    %29 = vector.load %arg10[%c17, %c0_19] : memref<18x128xf32, #tpu.memory_space<vmem>>, vector<1x128xf32>
    tpu.vector_store %arg10[%c17, %c0_19], %28 {strides = array<i32>} : memref<18x128xf32, #tpu.memory_space<vmem>>, vector<1x128xf32>,
    %c1_20 = arith.constant 1 : index
    %c0_21 = arith.constant 0 : index
    %30 = vector.load %arg10[%c1_20, %c0_21] : memref<18x128xf32, #tpu.memory_space<vmem>>, vector<16x128xf32>
    tpu.vector_store %arg10[%c1_20, %c0_21], %25 {strides = array<i32>} : memref<18x128xf32, #tpu.memory_space<vmem>>, vector<16x128xf32>,
    %c0_22 = arith.constant 0 : index
    %c0_23 = arith.constant 0 : index
    %31 = vector.load %arg10[%c0_22, %c0_23] : memref<18x128xf32, #tpu.memory_space<vmem>>, vector<18x128xf32>
    %cst_24 = arith.constant 0.000000e+00 : f32
    %32 = vector.broadcast %cst_24 : f32 to vector<16x128xf32>
    %c0_25 = arith.constant 0 : index
    %c0_26 = arith.constant 0 : index
    %33 = vector.load %arg5[%c0_25, %c0_26] : memref<1x128xf32, #tpu.memory_space<vmem>>, vector<1x128xf32>
    %34 = vector.broadcast %33 : vector<1x128xf32> to vector<16x128xf32>
    %35 = arith.addf %32, %34 : vector<16x128xf32>
    %36 = vector.extract_strided_slice %31 {offsets = [0, 0], sizes = [16, 128], strides = [1, 1]} : vector<18x128xf32> to vector<16x128xf32>
    %37 = arith.truncf %36 : vector<16x128xf32> to vector<16x128xbf16>
    %c0_27 = arith.constant 0 : index
    %c0_28 = arith.constant 0 : index
    %c0_29 = arith.constant 0 : index
    %38 = vector.load %arg4[%c0_27, %c0_28, %c0_29] : memref<3x128x128xbf16, #tpu.memory_space<vmem>>, vector<1x128x128xbf16>
    %39 = vector.shape_cast %38 : vector<1x128x128xbf16> to vector<128x128xbf16>
    %cst_30 = arith.constant dense<0.000000e+00> : vector<16x128xf32>
    %40 = tpu.matmul %37, %39, %cst_30 {dimension_numbers = #tpu.dot_dimension_numbers<[1], [0], [0], [1], [0, 0, 1, 1], [], []>} : vector<16x128xbf16>, vector<128x128xbf16>, vector<16x128xf32> -> vector<16x128xf32>
    %41 = arith.addf %35, %40 : vector<16x128xf32>
    %42 = vector.extract_strided_slice %31 {offsets = [1, 0], sizes = [16, 128], strides = [1, 1]} : vector<18x128xf32> to vector<16x128xf32>
    %43 = arith.truncf %42 : vector<16x128xf32> to vector<16x128xbf16>
    %c1_31 = arith.constant 1 : index
    %c0_32 = arith.constant 0 : index
    %c0_33 = arith.constant 0 : index
    %44 = vector.load %arg4[%c1_31, %c0_32, %c0_33] : memref<3x128x128xbf16, #tpu.memory_space<vmem>>, vector<1x128x128xbf16>
    %45 = vector.shape_cast %44 : vector<1x128x128xbf16> to vector<128x128xbf16>
    %cst_34 = arith.constant dense<0.000000e+00> : vector<16x128xf32>
    %46 = tpu.matmul %43, %45, %cst_34 {dimension_numbers = #tpu.dot_dimension_numbers<[1], [0], [0], [1], [0, 0, 1, 1], [], []>} : vector<16x128xbf16>, vector<128x128xbf16>, vector<16x128xf32> -> vector<16x128xf32>
    %47 = arith.addf %41, %46 : vector<16x128xf32>
    %48 = vector.extract_strided_slice %31 {offsets = [2, 0], sizes = [16, 128], strides = [1, 1]} : vector<18x128xf32> to vector<16x128xf32>
    %49 = arith.truncf %48 : vector<16x128xf32> to vector<16x128xbf16>
    %c2_35 = arith.constant 2 : index
    %c0_36 = arith.constant 0 : index
    %c0_37 = arith.constant 0 : index
    %50 = vector.load %arg4[%c2_35, %c0_36, %c0_37] : memref<3x128x128xbf16, #tpu.memory_space<vmem>>, vector<1x128x128xbf16>
    %51 = vector.shape_cast %50 : vector<1x128x128xbf16> to vector<128x128xbf16>
    %cst_38 = arith.constant dense<0.000000e+00> : vector<16x128xf32>
    %52 = tpu.matmul %49, %51, %cst_38 {dimension_numbers = #tpu.dot_dimension_numbers<[1], [0], [0], [1], [0, 0, 1, 1], [], []>} : vector<16x128xbf16>, vector<128x128xbf16>, vector<16x128xf32> -> vector<16x128xf32>
    %53 = arith.addf %47, %52 : vector<16x128xf32>
    %cst_39 = arith.constant 0.000000e+00 : f32
    %54 = vector.broadcast %cst_39 : f32 to vector<16x128xf32>
    %55 = arith.maximumf %53, %54 : vector<16x128xf32>
    %c0_40 = arith.constant 0 : index
    %c0_41 = arith.constant 0 : index
    %c0_42 = arith.constant 0 : index
    %56 = vector.load %arg8[%c0_40, %c0_41, %c0_42] : memref<1x16x128xf32, #tpu.memory_space<vmem>>, vector<1x16x128xf32>
    %57 = vector.shape_cast %56 : vector<1x16x128xf32> to vector<16x128xf32>
    %58 = vector.shape_cast %55 : vector<16x128xf32> to vector<1x16x128xf32>
    tpu.vector_store %arg8[%c0_40, %c0_41, %c0_42], %58 {strides = array<i32>} : memref<1x16x128xf32, #tpu.memory_space<vmem>>, vector<1x16x128xf32>,
    %cst_43 = arith.constant dense<0.000000e+00> : vector<128xf32>
    %59 = vector.multi_reduction <add>, %55, %cst_43 [0] : vector<16x128xf32> to vector<128xf32>
    %60 = vector.shape_cast %59 : vector<128xf32> to vector<1x128xf32>
    %61 = arith.truncf %60 : vector<1x128xf32> to vector<1x128xbf16>
    %c0_44 = arith.constant 0 : index
    %c0_45 = arith.constant 0 : index
    %62 = vector.load %arg6[%c0_44, %c0_45] : memref<128x32xbf16, #tpu.memory_space<vmem>>, vector<128x32xbf16>
    %cst_46 = arith.constant dense<0.000000e+00> : vector<1x32xf32>
    %63 = tpu.matmul %61, %62, %cst_46 {dimension_numbers = #tpu.dot_dimension_numbers<[1], [0], [0], [1], [0, 0, 1, 1], [], []>} : vector<1x128xbf16>, vector<128x32xbf16>, vector<1x32xf32> -> vector<1x32xf32>
    %c0_47 = arith.constant 0 : index
    %c0_48 = arith.constant 0 : index
    %64 = vector.load %arg7[%c0_47, %c0_48] : memref<1x32xf32, #tpu.memory_space<vmem>>, vector<1x32xf32>
    %65 = arith.addf %63, %64 : vector<1x32xf32>
    %c0_49 = arith.constant 0 : index
    %c0_50 = arith.constant 0 : index
    %c0_51 = arith.constant 0 : index
    %66 = vector.load %arg9[%c0_49, %c0_50, %c0_51] : memref<1x1x32xf32, #tpu.memory_space<vmem>>, vector<1x1x32xf32>
    %67 = vector.shape_cast %66 : vector<1x1x32xf32> to vector<1x32xf32>
    %68 = vector.shape_cast %65 : vector<1x32xf32> to vector<1x1x32xf32>
    tpu.vector_store %arg9[%c0_49, %c0_50, %c0_51], %68 {strides = array<i32>} : memref<1x1x32xf32, #tpu.memory_space<vmem>>, vector<1x1x32xf32>,
    return
  }
  func.func @transform_0(%arg0: i32) -> (i32, i32, i32) {
    %c0_i32 = arith.constant 0 : i32
    %c0_i32_0 = arith.constant 0 : i32
    %c0_i32_1 = arith.constant 0 : i32
    return %arg0, %c0_i32, %c0_i32_0 : i32, i32, i32
  }
  func.func @transform_1(%arg0: i32) -> (i32, i32, i32) {
    %c0_i32 = arith.constant 0 : i32
    %c0_i32_0 = arith.constant 0 : i32
    %c0_i32_1 = arith.constant 0 : i32
    %c0_i32_2 = arith.constant 0 : i32
    return %c0_i32, %c0_i32_0, %c0_i32_1 : i32, i32, i32
  }
  func.func @transform_2(%arg0: i32) -> (i32, i32) {
    %c0_i32 = arith.constant 0 : i32
    %c0_i32_0 = arith.constant 0 : i32
    %c0_i32_1 = arith.constant 0 : i32
    return %c0_i32, %c0_i32_0 : i32, i32
  }
  func.func @transform_3(%arg0: i32) -> (i32, i32, i32) {
    %c0_i32 = arith.constant 0 : i32
    %c0_i32_0 = arith.constant 0 : i32
    %c0_i32_1 = arith.constant 0 : i32
    %c0_i32_2 = arith.constant 0 : i32
    return %c0_i32, %c0_i32_0, %c0_i32_1 : i32, i32, i32
  }
  func.func @transform_4(%arg0: i32) -> (i32, i32) {
    %c0_i32 = arith.constant 0 : i32
    %c0_i32_0 = arith.constant 0 : i32
    %c0_i32_1 = arith.constant 0 : i32
    return %c0_i32, %c0_i32_0 : i32, i32
  }
  func.func @transform_5(%arg0: i32) -> (i32, i32) {
    %c0_i32 = arith.constant 0 : i32
    %c0_i32_0 = arith.constant 0 : i32
    %c0_i32_1 = arith.constant 0 : i32
    return %c0_i32, %c0_i32_0 : i32, i32
  }
  func.func @transform_6(%arg0: i32) -> (i32, i32) {
    %c0_i32 = arith.constant 0 : i32
    %c0_i32_0 = arith.constant 0 : i32
    %c0_i32_1 = arith.constant 0 : i32
    return %c0_i32, %c0_i32_0 : i32, i32
  }
  func.func @transform_7(%arg0: i32) -> (i32, i32, i32) {
    %c0_i32 = arith.constant 0 : i32
    %c0_i32_0 = arith.constant 0 : i32
    %c0_i32_1 = arith.constant 0 : i32
    return %arg0, %c0_i32, %c0_i32_0 : i32, i32, i32
  }
  func.func @transform_8(%arg0: i32) -> (i32, i32, i32) {
    %c0_i32 = arith.constant 0 : i32
    %c0_i32_0 = arith.constant 0 : i32
    %c0_i32_1 = arith.constant 0 : i32
    return %arg0, %c0_i32, %c0_i32_0 : i32, i32, i32
  }
}

module attributes {stable_mosaic.version = 11 : i64} {
  func.func @kernel(%arg0: i32, %arg1: memref<18x32xf32, #tpu.memory_space<vmem>>, %arg2: memref<32x128xbf16, #tpu.memory_space<vmem>>, %arg3: memref<32x128xbf16, #tpu.memory_space<vmem>>, %arg4: memref<1x128xf32, #tpu.memory_space<vmem>>, %arg5: memref<32x128xbf16, #tpu.memory_space<vmem>>, %arg6: memref<1x128xf32, #tpu.memory_space<vmem>>, %arg7: memref<18x128xf32, #tpu.memory_space<vmem>>, %arg8: memref<18x32xf32, #tpu.memory_space<vmem>>) attributes {dimension_semantics = [#tpu.dimension_semantics<arbitrary>], iteration_bounds = array<i64: 1>, scalar_prefetch = 0 : i64, scratch_operands = 1 : i64, tpu.core_type = #tpu.core_type<tc>, window_params = [{pipeline_mode = #tpu.pipeline_mode<synchronous>, transform_indices = @transform_0, window_bounds = array<i64: 18, 32>}, {pipeline_mode = #tpu.pipeline_mode<synchronous>, transform_indices = @transform_1, window_bounds = array<i64: 32, 128>}, {pipeline_mode = #tpu.pipeline_mode<synchronous>, transform_indices = @transform_2, window_bounds = array<i64: 32, 128>}, {pipeline_mode = #tpu.pipeline_mode<synchronous>, transform_indices = @transform_3, window_bounds = array<i64: 1, 128>}, {pipeline_mode = #tpu.pipeline_mode<synchronous>, transform_indices = @transform_4, window_bounds = array<i64: 32, 128>}, {pipeline_mode = #tpu.pipeline_mode<synchronous>, transform_indices = @transform_5, window_bounds = array<i64: 1, 128>}, {pipeline_mode = #tpu.pipeline_mode<synchronous>, transform_indices = @transform_6, window_bounds = array<i64: 18, 128>}]} {
    %c0 = arith.constant 0 : index
    %c0_0 = arith.constant 0 : index
    %0 = vector.load %arg1[%c0, %c0_0] : memref<18x32xf32, #tpu.memory_space<vmem>>, vector<18x32xf32>
    %1 = arith.truncf %0 : vector<18x32xf32> to vector<18x32xbf16>
    %c0_1 = arith.constant 0 : index
    %c0_2 = arith.constant 0 : index
    %2 = vector.load %arg2[%c0_1, %c0_2] : memref<32x128xbf16, #tpu.memory_space<vmem>>, vector<32x128xbf16>
    %cst = arith.constant dense<0.000000e+00> : vector<18x128xf32>
    %3 = tpu.matmul %1, %2, %cst {dimension_numbers = #tpu.dot_dimension_numbers<[1], [0], [0], [1], [0, 0, 1, 1], [], []>} : vector<18x32xbf16>, vector<32x128xbf16>, vector<18x128xf32> -> vector<18x128xf32>
    %c0_3 = arith.constant 0 : index
    %c0_4 = arith.constant 0 : index
    %4 = vector.load %arg4[%c0_3, %c0_4] : memref<1x128xf32, #tpu.memory_space<vmem>>, vector<1x128xf32>
    %5 = vector.broadcast %4 : vector<1x128xf32> to vector<18x128xf32>
    %6 = arith.addf %3, %5 : vector<18x128xf32>
    %c0_5 = arith.constant 0 : index
    %c0_6 = arith.constant 0 : index
    %7 = vector.load %arg3[%c0_5, %c0_6] : memref<32x128xbf16, #tpu.memory_space<vmem>>, vector<32x128xbf16>
    %cst_7 = arith.constant 0.000000e+00 : f32
    %8 = vector.broadcast %cst_7 : f32 to vector<2x32xf32>
    %cst_8 = arith.constant 0.000000e+00 : f32
    %9 = vector.broadcast %cst_8 : f32 to vector<2x32xf32>
    %10 = vector.extract_strided_slice %6 {offsets = [0, 0], sizes = [2, 128], strides = [1, 1]} : vector<18x128xf32> to vector<2x128xf32>
    %11 = arith.truncf %8 : vector<2x32xf32> to vector<2x32xbf16>
    %cst_9 = arith.constant dense<0.000000e+00> : vector<2x128xf32>
    %12 = tpu.matmul %11, %7, %cst_9 {dimension_numbers = #tpu.dot_dimension_numbers<[1], [0], [0], [1], [0, 0, 1, 1], [], []>} : vector<2x32xbf16>, vector<32x128xbf16>, vector<2x128xf32> -> vector<2x128xf32>
    %13 = arith.addf %10, %12 : vector<2x128xf32>
    %14 = arith.negf %13 : vector<2x128xf32>
    %15 = math.exp %14 : vector<2x128xf32>
    %cst_10 = arith.constant 1.000000e+00 : f32
    %16 = vector.broadcast %cst_10 : f32 to vector<2x128xf32>
    %17 = arith.addf %16, %15 : vector<2x128xf32>
    %18 = arith.divf %16, %17 : vector<2x128xf32>
    %19 = math.tanh %13 : vector<2x128xf32>
    %20 = vector.extract_strided_slice %18 {offsets = [0, 0], sizes = [2, 32], strides = [1, 1]} : vector<2x128xf32> to vector<2x32xf32>
    %21 = vector.extract_strided_slice %18 {offsets = [0, 32], sizes = [2, 32], strides = [1, 1]} : vector<2x128xf32> to vector<2x32xf32>
    %22 = vector.extract_strided_slice %19 {offsets = [0, 64], sizes = [2, 32], strides = [1, 1]} : vector<2x128xf32> to vector<2x32xf32>
    %23 = vector.extract_strided_slice %18 {offsets = [0, 96], sizes = [2, 32], strides = [1, 1]} : vector<2x128xf32> to vector<2x32xf32>
    %24 = arith.mulf %21, %9 : vector<2x32xf32>
    %25 = arith.mulf %20, %22 : vector<2x32xf32>
    %26 = arith.addf %24, %25 : vector<2x32xf32>
    %27 = math.tanh %26 : vector<2x32xf32>
    %28 = arith.mulf %23, %27 : vector<2x32xf32>
    %c0_11 = arith.constant 0 : index
    %c0_12 = arith.constant 0 : index
    %29 = vector.load %arg8[%c0_11, %c0_12] : memref<18x32xf32, #tpu.memory_space<vmem>>, vector<2x32xf32>
    tpu.vector_store %arg8[%c0_11, %c0_12], %28 {strides = array<i32>} : memref<18x32xf32, #tpu.memory_space<vmem>>, vector<2x32xf32>,
    %30 = vector.extract_strided_slice %6 {offsets = [2, 0], sizes = [2, 128], strides = [1, 1]} : vector<18x128xf32> to vector<2x128xf32>
    %31 = arith.truncf %28 : vector<2x32xf32> to vector<2x32xbf16>
    %cst_13 = arith.constant dense<0.000000e+00> : vector<2x128xf32>
    %32 = tpu.matmul %31, %7, %cst_13 {dimension_numbers = #tpu.dot_dimension_numbers<[1], [0], [0], [1], [0, 0, 1, 1], [], []>} : vector<2x32xbf16>, vector<32x128xbf16>, vector<2x128xf32> -> vector<2x128xf32>
    %33 = arith.addf %30, %32 : vector<2x128xf32>
    %34 = arith.negf %33 : vector<2x128xf32>
    %35 = math.exp %34 : vector<2x128xf32>
    %cst_14 = arith.constant 1.000000e+00 : f32
    %36 = vector.broadcast %cst_14 : f32 to vector<2x128xf32>
    %37 = arith.addf %36, %35 : vector<2x128xf32>
    %38 = arith.divf %36, %37 : vector<2x128xf32>
    %39 = math.tanh %33 : vector<2x128xf32>
    %40 = vector.extract_strided_slice %38 {offsets = [0, 0], sizes = [2, 32], strides = [1, 1]} : vector<2x128xf32> to vector<2x32xf32>
    %41 = vector.extract_strided_slice %38 {offsets = [0, 32], sizes = [2, 32], strides = [1, 1]} : vector<2x128xf32> to vector<2x32xf32>
    %42 = vector.extract_strided_slice %39 {offsets = [0, 64], sizes = [2, 32], strides = [1, 1]} : vector<2x128xf32> to vector<2x32xf32>
    %43 = vector.extract_strided_slice %38 {offsets = [0, 96], sizes = [2, 32], strides = [1, 1]} : vector<2x128xf32> to vector<2x32xf32>
    %44 = arith.mulf %41, %26 : vector<2x32xf32>
    %45 = arith.mulf %40, %42 : vector<2x32xf32>
    %46 = arith.addf %44, %45 : vector<2x32xf32>
    %47 = math.tanh %46 : vector<2x32xf32>
    %48 = arith.mulf %43, %47 : vector<2x32xf32>
    %c2 = arith.constant 2 : index
    %c0_15 = arith.constant 0 : index
    %49 = vector.load %arg8[%c2, %c0_15] : memref<18x32xf32, #tpu.memory_space<vmem>>, vector<2x32xf32>
    tpu.vector_store %arg8[%c2, %c0_15], %48 {strides = array<i32>} : memref<18x32xf32, #tpu.memory_space<vmem>>, vector<2x32xf32>,
    %50 = vector.extract_strided_slice %6 {offsets = [4, 0], sizes = [2, 128], strides = [1, 1]} : vector<18x128xf32> to vector<2x128xf32>
    %51 = arith.truncf %48 : vector<2x32xf32> to vector<2x32xbf16>
    %cst_16 = arith.constant dense<0.000000e+00> : vector<2x128xf32>
    %52 = tpu.matmul %51, %7, %cst_16 {dimension_numbers = #tpu.dot_dimension_numbers<[1], [0], [0], [1], [0, 0, 1, 1], [], []>} : vector<2x32xbf16>, vector<32x128xbf16>, vector<2x128xf32> -> vector<2x128xf32>
    %53 = arith.addf %50, %52 : vector<2x128xf32>
    %54 = arith.negf %53 : vector<2x128xf32>
    %55 = math.exp %54 : vector<2x128xf32>
    %cst_17 = arith.constant 1.000000e+00 : f32
    %56 = vector.broadcast %cst_17 : f32 to vector<2x128xf32>
    %57 = arith.addf %56, %55 : vector<2x128xf32>
    %58 = arith.divf %56, %57 : vector<2x128xf32>
    %59 = math.tanh %53 : vector<2x128xf32>
    %60 = vector.extract_strided_slice %58 {offsets = [0, 0], sizes = [2, 32], strides = [1, 1]} : vector<2x128xf32> to vector<2x32xf32>
    %61 = vector.extract_strided_slice %58 {offsets = [0, 32], sizes = [2, 32], strides = [1, 1]} : vector<2x128xf32> to vector<2x32xf32>
    %62 = vector.extract_strided_slice %59 {offsets = [0, 64], sizes = [2, 32], strides = [1, 1]} : vector<2x128xf32> to vector<2x32xf32>
    %63 = vector.extract_strided_slice %58 {offsets = [0, 96], sizes = [2, 32], strides = [1, 1]} : vector<2x128xf32> to vector<2x32xf32>
    %64 = arith.mulf %61, %46 : vector<2x32xf32>
    %65 = arith.mulf %60, %62 : vector<2x32xf32>
    %66 = arith.addf %64, %65 : vector<2x32xf32>
    %67 = math.tanh %66 : vector<2x32xf32>
    %68 = arith.mulf %63, %67 : vector<2x32xf32>
    %c4 = arith.constant 4 : index
    %c0_18 = arith.constant 0 : index
    %69 = vector.load %arg8[%c4, %c0_18] : memref<18x32xf32, #tpu.memory_space<vmem>>, vector<2x32xf32>
    tpu.vector_store %arg8[%c4, %c0_18], %68 {strides = array<i32>} : memref<18x32xf32, #tpu.memory_space<vmem>>, vector<2x32xf32>,
    %70 = vector.extract_strided_slice %6 {offsets = [6, 0], sizes = [2, 128], strides = [1, 1]} : vector<18x128xf32> to vector<2x128xf32>
    %71 = arith.truncf %68 : vector<2x32xf32> to vector<2x32xbf16>
    %cst_19 = arith.constant dense<0.000000e+00> : vector<2x128xf32>
    %72 = tpu.matmul %71, %7, %cst_19 {dimension_numbers = #tpu.dot_dimension_numbers<[1], [0], [0], [1], [0, 0, 1, 1], [], []>} : vector<2x32xbf16>, vector<32x128xbf16>, vector<2x128xf32> -> vector<2x128xf32>
    %73 = arith.addf %70, %72 : vector<2x128xf32>
    %74 = arith.negf %73 : vector<2x128xf32>
    %75 = math.exp %74 : vector<2x128xf32>
    %cst_20 = arith.constant 1.000000e+00 : f32
    %76 = vector.broadcast %cst_20 : f32 to vector<2x128xf32>
    %77 = arith.addf %76, %75 : vector<2x128xf32>
    %78 = arith.divf %76, %77 : vector<2x128xf32>
    %79 = math.tanh %73 : vector<2x128xf32>
    %80 = vector.extract_strided_slice %78 {offsets = [0, 0], sizes = [2, 32], strides = [1, 1]} : vector<2x128xf32> to vector<2x32xf32>
    %81 = vector.extract_strided_slice %78 {offsets = [0, 32], sizes = [2, 32], strides = [1, 1]} : vector<2x128xf32> to vector<2x32xf32>
    %82 = vector.extract_strided_slice %79 {offsets = [0, 64], sizes = [2, 32], strides = [1, 1]} : vector<2x128xf32> to vector<2x32xf32>
    %83 = vector.extract_strided_slice %78 {offsets = [0, 96], sizes = [2, 32], strides = [1, 1]} : vector<2x128xf32> to vector<2x32xf32>
    %84 = arith.mulf %81, %66 : vector<2x32xf32>
    %85 = arith.mulf %80, %82 : vector<2x32xf32>
    %86 = arith.addf %84, %85 : vector<2x32xf32>
    %87 = math.tanh %86 : vector<2x32xf32>
    %88 = arith.mulf %83, %87 : vector<2x32xf32>
    %c6 = arith.constant 6 : index
    %c0_21 = arith.constant 0 : index
    %89 = vector.load %arg8[%c6, %c0_21] : memref<18x32xf32, #tpu.memory_space<vmem>>, vector<2x32xf32>
    tpu.vector_store %arg8[%c6, %c0_21], %88 {strides = array<i32>} : memref<18x32xf32, #tpu.memory_space<vmem>>, vector<2x32xf32>,
    %90 = vector.extract_strided_slice %6 {offsets = [8, 0], sizes = [2, 128], strides = [1, 1]} : vector<18x128xf32> to vector<2x128xf32>
    %91 = arith.truncf %88 : vector<2x32xf32> to vector<2x32xbf16>
    %cst_22 = arith.constant dense<0.000000e+00> : vector<2x128xf32>
    %92 = tpu.matmul %91, %7, %cst_22 {dimension_numbers = #tpu.dot_dimension_numbers<[1], [0], [0], [1], [0, 0, 1, 1], [], []>} : vector<2x32xbf16>, vector<32x128xbf16>, vector<2x128xf32> -> vector<2x128xf32>
    %93 = arith.addf %90, %92 : vector<2x128xf32>
    %94 = arith.negf %93 : vector<2x128xf32>
    %95 = math.exp %94 : vector<2x128xf32>
    %cst_23 = arith.constant 1.000000e+00 : f32
    %96 = vector.broadcast %cst_23 : f32 to vector<2x128xf32>
    %97 = arith.addf %96, %95 : vector<2x128xf32>
    %98 = arith.divf %96, %97 : vector<2x128xf32>
    %99 = math.tanh %93 : vector<2x128xf32>
    %100 = vector.extract_strided_slice %98 {offsets = [0, 0], sizes = [2, 32], strides = [1, 1]} : vector<2x128xf32> to vector<2x32xf32>
    %101 = vector.extract_strided_slice %98 {offsets = [0, 32], sizes = [2, 32], strides = [1, 1]} : vector<2x128xf32> to vector<2x32xf32>
    %102 = vector.extract_strided_slice %99 {offsets = [0, 64], sizes = [2, 32], strides = [1, 1]} : vector<2x128xf32> to vector<2x32xf32>
    %103 = vector.extract_strided_slice %98 {offsets = [0, 96], sizes = [2, 32], strides = [1, 1]} : vector<2x128xf32> to vector<2x32xf32>
    %104 = arith.mulf %101, %86 : vector<2x32xf32>
    %105 = arith.mulf %100, %102 : vector<2x32xf32>
    %106 = arith.addf %104, %105 : vector<2x32xf32>
    %107 = math.tanh %106 : vector<2x32xf32>
    %108 = arith.mulf %103, %107 : vector<2x32xf32>
    %c8 = arith.constant 8 : index
    %c0_24 = arith.constant 0 : index
    %109 = vector.load %arg8[%c8, %c0_24] : memref<18x32xf32, #tpu.memory_space<vmem>>, vector<2x32xf32>
    tpu.vector_store %arg8[%c8, %c0_24], %108 {strides = array<i32>} : memref<18x32xf32, #tpu.memory_space<vmem>>, vector<2x32xf32>,
    %110 = vector.extract_strided_slice %6 {offsets = [10, 0], sizes = [2, 128], strides = [1, 1]} : vector<18x128xf32> to vector<2x128xf32>
    %111 = arith.truncf %108 : vector<2x32xf32> to vector<2x32xbf16>
    %cst_25 = arith.constant dense<0.000000e+00> : vector<2x128xf32>
    %112 = tpu.matmul %111, %7, %cst_25 {dimension_numbers = #tpu.dot_dimension_numbers<[1], [0], [0], [1], [0, 0, 1, 1], [], []>} : vector<2x32xbf16>, vector<32x128xbf16>, vector<2x128xf32> -> vector<2x128xf32>
    %113 = arith.addf %110, %112 : vector<2x128xf32>
    %114 = arith.negf %113 : vector<2x128xf32>
    %115 = math.exp %114 : vector<2x128xf32>
    %cst_26 = arith.constant 1.000000e+00 : f32
    %116 = vector.broadcast %cst_26 : f32 to vector<2x128xf32>
    %117 = arith.addf %116, %115 : vector<2x128xf32>
    %118 = arith.divf %116, %117 : vector<2x128xf32>
    %119 = math.tanh %113 : vector<2x128xf32>
    %120 = vector.extract_strided_slice %118 {offsets = [0, 0], sizes = [2, 32], strides = [1, 1]} : vector<2x128xf32> to vector<2x32xf32>
    %121 = vector.extract_strided_slice %118 {offsets = [0, 32], sizes = [2, 32], strides = [1, 1]} : vector<2x128xf32> to vector<2x32xf32>
    %122 = vector.extract_strided_slice %119 {offsets = [0, 64], sizes = [2, 32], strides = [1, 1]} : vector<2x128xf32> to vector<2x32xf32>
    %123 = vector.extract_strided_slice %118 {offsets = [0, 96], sizes = [2, 32], strides = [1, 1]} : vector<2x128xf32> to vector<2x32xf32>
    %124 = arith.mulf %121, %106 : vector<2x32xf32>
    %125 = arith.mulf %120, %122 : vector<2x32xf32>
    %126 = arith.addf %124, %125 : vector<2x32xf32>
    %127 = math.tanh %126 : vector<2x32xf32>
    %128 = arith.mulf %123, %127 : vector<2x32xf32>
    %c10 = arith.constant 10 : index
    %c0_27 = arith.constant 0 : index
    %129 = vector.load %arg8[%c10, %c0_27] : memref<18x32xf32, #tpu.memory_space<vmem>>, vector<2x32xf32>
    tpu.vector_store %arg8[%c10, %c0_27], %128 {strides = array<i32>} : memref<18x32xf32, #tpu.memory_space<vmem>>, vector<2x32xf32>,
    %130 = vector.extract_strided_slice %6 {offsets = [12, 0], sizes = [2, 128], strides = [1, 1]} : vector<18x128xf32> to vector<2x128xf32>
    %131 = arith.truncf %128 : vector<2x32xf32> to vector<2x32xbf16>
    %cst_28 = arith.constant dense<0.000000e+00> : vector<2x128xf32>
    %132 = tpu.matmul %131, %7, %cst_28 {dimension_numbers = #tpu.dot_dimension_numbers<[1], [0], [0], [1], [0, 0, 1, 1], [], []>} : vector<2x32xbf16>, vector<32x128xbf16>, vector<2x128xf32> -> vector<2x128xf32>
    %133 = arith.addf %130, %132 : vector<2x128xf32>
    %134 = arith.negf %133 : vector<2x128xf32>
    %135 = math.exp %134 : vector<2x128xf32>
    %cst_29 = arith.constant 1.000000e+00 : f32
    %136 = vector.broadcast %cst_29 : f32 to vector<2x128xf32>
    %137 = arith.addf %136, %135 : vector<2x128xf32>
    %138 = arith.divf %136, %137 : vector<2x128xf32>
    %139 = math.tanh %133 : vector<2x128xf32>
    %140 = vector.extract_strided_slice %138 {offsets = [0, 0], sizes = [2, 32], strides = [1, 1]} : vector<2x128xf32> to vector<2x32xf32>
    %141 = vector.extract_strided_slice %138 {offsets = [0, 32], sizes = [2, 32], strides = [1, 1]} : vector<2x128xf32> to vector<2x32xf32>
    %142 = vector.extract_strided_slice %139 {offsets = [0, 64], sizes = [2, 32], strides = [1, 1]} : vector<2x128xf32> to vector<2x32xf32>
    %143 = vector.extract_strided_slice %138 {offsets = [0, 96], sizes = [2, 32], strides = [1, 1]} : vector<2x128xf32> to vector<2x32xf32>
    %144 = arith.mulf %141, %126 : vector<2x32xf32>
    %145 = arith.mulf %140, %142 : vector<2x32xf32>
    %146 = arith.addf %144, %145 : vector<2x32xf32>
    %147 = math.tanh %146 : vector<2x32xf32>
    %148 = arith.mulf %143, %147 : vector<2x32xf32>
    %c12 = arith.constant 12 : index
    %c0_30 = arith.constant 0 : index
    %149 = vector.load %arg8[%c12, %c0_30] : memref<18x32xf32, #tpu.memory_space<vmem>>, vector<2x32xf32>
    tpu.vector_store %arg8[%c12, %c0_30], %148 {strides = array<i32>} : memref<18x32xf32, #tpu.memory_space<vmem>>, vector<2x32xf32>,
    %150 = vector.extract_strided_slice %6 {offsets = [14, 0], sizes = [2, 128], strides = [1, 1]} : vector<18x128xf32> to vector<2x128xf32>
    %151 = arith.truncf %148 : vector<2x32xf32> to vector<2x32xbf16>
    %cst_31 = arith.constant dense<0.000000e+00> : vector<2x128xf32>
    %152 = tpu.matmul %151, %7, %cst_31 {dimension_numbers = #tpu.dot_dimension_numbers<[1], [0], [0], [1], [0, 0, 1, 1], [], []>} : vector<2x32xbf16>, vector<32x128xbf16>, vector<2x128xf32> -> vector<2x128xf32>
    %153 = arith.addf %150, %152 : vector<2x128xf32>
    %154 = arith.negf %153 : vector<2x128xf32>
    %155 = math.exp %154 : vector<2x128xf32>
    %cst_32 = arith.constant 1.000000e+00 : f32
    %156 = vector.broadcast %cst_32 : f32 to vector<2x128xf32>
    %157 = arith.addf %156, %155 : vector<2x128xf32>
    %158 = arith.divf %156, %157 : vector<2x128xf32>
    %159 = math.tanh %153 : vector<2x128xf32>
    %160 = vector.extract_strided_slice %158 {offsets = [0, 0], sizes = [2, 32], strides = [1, 1]} : vector<2x128xf32> to vector<2x32xf32>
    %161 = vector.extract_strided_slice %158 {offsets = [0, 32], sizes = [2, 32], strides = [1, 1]} : vector<2x128xf32> to vector<2x32xf32>
    %162 = vector.extract_strided_slice %159 {offsets = [0, 64], sizes = [2, 32], strides = [1, 1]} : vector<2x128xf32> to vector<2x32xf32>
    %163 = vector.extract_strided_slice %158 {offsets = [0, 96], sizes = [2, 32], strides = [1, 1]} : vector<2x128xf32> to vector<2x32xf32>
    %164 = arith.mulf %161, %146 : vector<2x32xf32>
    %165 = arith.mulf %160, %162 : vector<2x32xf32>
    %166 = arith.addf %164, %165 : vector<2x32xf32>
    %167 = math.tanh %166 : vector<2x32xf32>
    %168 = arith.mulf %163, %167 : vector<2x32xf32>
    %c14 = arith.constant 14 : index
    %c0_33 = arith.constant 0 : index
    %169 = vector.load %arg8[%c14, %c0_33] : memref<18x32xf32, #tpu.memory_space<vmem>>, vector<2x32xf32>
    tpu.vector_store %arg8[%c14, %c0_33], %168 {strides = array<i32>} : memref<18x32xf32, #tpu.memory_space<vmem>>, vector<2x32xf32>,
    %170 = vector.extract_strided_slice %6 {offsets = [16, 0], sizes = [2, 128], strides = [1, 1]} : vector<18x128xf32> to vector<2x128xf32>
    %171 = arith.truncf %168 : vector<2x32xf32> to vector<2x32xbf16>
    %cst_34 = arith.constant dense<0.000000e+00> : vector<2x128xf32>
    %172 = tpu.matmul %171, %7, %cst_34 {dimension_numbers = #tpu.dot_dimension_numbers<[1], [0], [0], [1], [0, 0, 1, 1], [], []>} : vector<2x32xbf16>, vector<32x128xbf16>, vector<2x128xf32> -> vector<2x128xf32>
    %173 = arith.addf %170, %172 : vector<2x128xf32>
    %174 = arith.negf %173 : vector<2x128xf32>
    %175 = math.exp %174 : vector<2x128xf32>
    %cst_35 = arith.constant 1.000000e+00 : f32
    %176 = vector.broadcast %cst_35 : f32 to vector<2x128xf32>
    %177 = arith.addf %176, %175 : vector<2x128xf32>
    %178 = arith.divf %176, %177 : vector<2x128xf32>
    %179 = math.tanh %173 : vector<2x128xf32>
    %180 = vector.extract_strided_slice %178 {offsets = [0, 0], sizes = [2, 32], strides = [1, 1]} : vector<2x128xf32> to vector<2x32xf32>
    %181 = vector.extract_strided_slice %178 {offsets = [0, 32], sizes = [2, 32], strides = [1, 1]} : vector<2x128xf32> to vector<2x32xf32>
    %182 = vector.extract_strided_slice %179 {offsets = [0, 64], sizes = [2, 32], strides = [1, 1]} : vector<2x128xf32> to vector<2x32xf32>
    %183 = vector.extract_strided_slice %178 {offsets = [0, 96], sizes = [2, 32], strides = [1, 1]} : vector<2x128xf32> to vector<2x32xf32>
    %184 = arith.mulf %181, %166 : vector<2x32xf32>
    %185 = arith.mulf %180, %182 : vector<2x32xf32>
    %186 = arith.addf %184, %185 : vector<2x32xf32>
    %187 = math.tanh %186 : vector<2x32xf32>
    %188 = arith.mulf %183, %187 : vector<2x32xf32>
    %c16 = arith.constant 16 : index
    %c0_36 = arith.constant 0 : index
    %189 = vector.load %arg8[%c16, %c0_36] : memref<18x32xf32, #tpu.memory_space<vmem>>, vector<2x32xf32>
    tpu.vector_store %arg8[%c16, %c0_36], %188 {strides = array<i32>} : memref<18x32xf32, #tpu.memory_space<vmem>>, vector<2x32xf32>,
    %c0_37 = arith.constant 0 : index
    %c0_38 = arith.constant 0 : index
    %190 = vector.load %arg8[%c0_37, %c0_38] : memref<18x32xf32, #tpu.memory_space<vmem>>, vector<18x32xf32>
    %191 = arith.truncf %190 : vector<18x32xf32> to vector<18x32xbf16>
    %c0_39 = arith.constant 0 : index
    %c0_40 = arith.constant 0 : index
    %192 = vector.load %arg5[%c0_39, %c0_40] : memref<32x128xbf16, #tpu.memory_space<vmem>>, vector<32x128xbf16>
    %cst_41 = arith.constant dense<0.000000e+00> : vector<18x128xf32>
    %193 = tpu.matmul %191, %192, %cst_41 {dimension_numbers = #tpu.dot_dimension_numbers<[1], [0], [0], [1], [0, 0, 1, 1], [], []>} : vector<18x32xbf16>, vector<32x128xbf16>, vector<18x128xf32> -> vector<18x128xf32>
    %c0_42 = arith.constant 0 : index
    %c0_43 = arith.constant 0 : index
    %194 = vector.load %arg6[%c0_42, %c0_43] : memref<1x128xf32, #tpu.memory_space<vmem>>, vector<1x128xf32>
    %195 = vector.broadcast %194 : vector<1x128xf32> to vector<18x128xf32>
    %196 = arith.addf %193, %195 : vector<18x128xf32>
    %c0_44 = arith.constant 0 : index
    %c0_45 = arith.constant 0 : index
    %197 = vector.load %arg7[%c0_44, %c0_45] : memref<18x128xf32, #tpu.memory_space<vmem>>, vector<18x128xf32>
    tpu.vector_store %arg7[%c0_44, %c0_45], %196 {strides = array<i32>} : memref<18x128xf32, #tpu.memory_space<vmem>>, vector<18x128xf32>,
    return
  }
  func.func @transform_0(%arg0: i32) -> (i32, i32) {
    %c0_i32 = arith.constant 0 : i32
    %c0_i32_0 = arith.constant 0 : i32
    %c0_i32_1 = arith.constant 0 : i32
    return %c0_i32, %c0_i32_0 : i32, i32
  }
  func.func @transform_1(%arg0: i32) -> (i32, i32) {
    %c0_i32 = arith.constant 0 : i32
    %c0_i32_0 = arith.constant 0 : i32
    %c0_i32_1 = arith.constant 0 : i32
    return %c0_i32, %c0_i32_0 : i32, i32
  }
  func.func @transform_2(%arg0: i32) -> (i32, i32) {
    %c0_i32 = arith.constant 0 : i32
    %c0_i32_0 = arith.constant 0 : i32
    %c0_i32_1 = arith.constant 0 : i32
    return %c0_i32, %c0_i32_0 : i32, i32
  }
  func.func @transform_3(%arg0: i32) -> (i32, i32) {
    %c0_i32 = arith.constant 0 : i32
    %c0_i32_0 = arith.constant 0 : i32
    %c0_i32_1 = arith.constant 0 : i32
    return %c0_i32, %c0_i32_0 : i32, i32
  }
  func.func @transform_4(%arg0: i32) -> (i32, i32) {
    %c0_i32 = arith.constant 0 : i32
    %c0_i32_0 = arith.constant 0 : i32
    %c0_i32_1 = arith.constant 0 : i32
    return %c0_i32, %c0_i32_0 : i32, i32
  }
  func.func @transform_5(%arg0: i32) -> (i32, i32) {
    %c0_i32 = arith.constant 0 : i32
    %c0_i32_0 = arith.constant 0 : i32
    %c0_i32_1 = arith.constant 0 : i32
    return %c0_i32, %c0_i32_0 : i32, i32
  }
  func.func @transform_6(%arg0: i32) -> (i32, i32) {
    %c0_i32 = arith.constant 0 : i32
    %c0_i32_0 = arith.constant 0 : i32
    %c0_i32_1 = arith.constant 0 : i32
    return %c0_i32, %c0_i32_0 : i32, i32
  }
}

</mosaic_0001>

<llo_original>
// kernel: gradcam_forward.2
$region0: #{gradcam_forward.2}
  #allocation0 [shape = 'u32[]', space=smem, size = 0x4, offset = 0x4, fixed_abs, tag = 'smem constant byte address 0x4 - core index']
  #allocation1 [shape = 'u32[144,128]{1,0:T(1,128)}', space=vmem, size = 0x12000, scoped, tag = 'internal scratch']
  #allocation2 [shape = 'f32[18,128]{1,0:T(8,128)}', space=vmem, size = 0x3000, scoped, tag = 'scratch operand']
  %s0 = inlined_call_operand.vmem [shape: f32[2,18,48], index: 0, kind: input, shape index: {}]
  %s1 = inlined_call_operand.vmem [shape: bf16[3,48,128], index: 1, kind: input, shape index: {}]
  %s2 = inlined_call_operand.vmem [shape: f32[1,128], index: 2, kind: input, shape index: {}]
  %s3 = inlined_call_operand.vmem [shape: bf16[3,128,128], index: 3, kind: input, shape index: {}]
  %s4 = inlined_call_operand.vmem [shape: f32[1,128], index: 4, kind: input, shape index: {}]
  %s5 = inlined_call_operand.vmem [shape: bf16[128,32], index: 5, kind: input, shape index: {}]
  %s6 = inlined_call_operand.vmem [shape: f32[1,32], index: 6, kind: input, shape index: {}]
  %s7 = inlined_call_operand.vmem [shape: f32[2,16,128], index: 7, kind: output, shape index: {0}]
  %s8 = inlined_call_operand.vmem [shape: f32[2,1,32], index: 8, kind: output, shape index: {1}]
  %9 = xla_tuple %s7, %s8
  %s10 = sld [smem:[#allocation0]]
  $region69: #{gradcam_forward.2} parent=0
    _
  %s12 = ssub.s32 1, %s10
  %s13 = scalar_select 0, %s12, %s10
  loop: start=0, step=1, limit=4
  $region2: #{gradcam_forward.2} parent=0 // loop_pre_header
    _
  $region3: #{gradcam_forward.2} parent=0 // loop_header
    %s15 = sphi 0, %s19
    %p16 = scmp.ge.s32.totalorder %s15, 4
    %s25 = sphi 0, %s27
    %s28 = sphi 0, %s25
    %s29 = sphi 0, %s28
    %s45 = sphi 0, %s29
    %s49 = sphi 0, %s49
    %s51 = sphi 0, %s49
    %s52 = sphi 0, %s51
    %s66 = sphi 0, %s52
    %s70 = sphi 0, %s70
    %s72 = sphi 0, %s70
    %s73 = sphi 0, %s72
    %s87 = sphi 0, %s73
    %s91 = sphi 0, %s91
    %s93 = sphi 0, %s91
    %s94 = sphi 0, %s93
    %s108 = sphi 0, %s94
    %s112 = sphi 0, %s112
    %s114 = sphi 0, %s112
    %s115 = sphi 0, %s114
    %s129 = sphi 0, %s115
    %s133 = sphi 0, %s133
    %s135 = sphi 0, %s133
    %s136 = sphi 0, %s135
    %s150 = sphi 0, %s136
    %s154 = sphi 0, %s154
    %s156 = sphi 0, %s154
    %s157 = sphi 0, %s156
    %s171 = sphi 0, %s157
    %s177 = sphi 0, %s179
    %s180 = sphi 0, %s177
    %s181 = sphi 0, %s180
    %s197 = sphi 0, %s181
    %s203 = sphi 0, %s205
    %s206 = sphi 0, %s203
    %s207 = sphi 0, %s206
    %s223 = sphi 0, %s207
  $region4: #{gradcam_forward.2} parent=0 // loop_header_branch
    %18 = sbr.rel (%p16) target = $region8
  $region5: #{gradcam_forward.2} parent=0 // loop_body
    %s20 = ssub.s32 %s15, 1
    %s21 = ssub.s32 %s15, 2
    %s22 = sadd.s32 %s15, 1
    %s23 = ssub.s32 %s15, %s22
    %p24 = scmp.eq.s32.totalorder %s23, 0
    %s26 = sadd.s32 %s25, 1
    %s27 = scalar_select %p24, %s25, %s26
    %p30 = pneg %p24
    %p31 = scmp.eq.s32.totalorder %s15, 1
    %p32 = por %p30, %p31
    %p33 = scmp.ne.s32.totalorder %s25, %s28
    %p34 = scmp.eq.s32.totalorder %s15, 0
    %p35 = por %p33, %p34
    %p36 = scmp.ne.s32.totalorder %s25, %s28
    %p37 = scmp.eq.s32.totalorder %s20, 1
    %p38 = por %p36, %p37
    %p39 = scmp.ne.s32.totalorder %s28, %s29
    %p40 = scmp.eq.s32.totalorder %s20, 0
    %p41 = por %p39, %p40
    %p42 = scmp.ne.s32.totalorder %s28, %s29
    %p43 = scmp.eq.s32.totalorder %s21, 1
    %p44 = por %p42, %p43
    %p46 = scmp.ne.s32.totalorder %s29, %s45
    %p47 = scmp.eq.s32.totalorder %s21, 0
    %p48 = por %p46, %p47
    %s50 = sadd.s32 %s49, 1
    %p53 = scmp.eq.s32.totalorder %s15, 1
    %p54 = scmp.ne.s32.totalorder %s49, %s51
    %p55 = scmp.eq.s32.totalorder %s15, 0
    %p56 = por %p54, %p55
    %p57 = scmp.ne.s32.totalorder %s49, %s51
    %p58 = scmp.eq.s32.totalorder %s20, 1
    %p59 = por %p57, %p58
    %p60 = scmp.ne.s32.totalorder %s51, %s52
    %p61 = scmp.eq.s32.totalorder %s20, 0
    %p62 = por %p60, %p61
    %p63 = scmp.ne.s32.totalorder %s51, %s52
    %p64 = scmp.eq.s32.totalorder %s21, 1
    %p65 = por %p63, %p64
    %p67 = scmp.ne.s32.totalorder %s52, %s66
    %p68 = scmp.eq.s32.totalorder %s21, 0
    %p69 = por %p67, %p68
    %s71 = sadd.s32 %s70, 1
    %p74 = scmp.eq.s32.totalorder %s15, 1
    %p75 = scmp.ne.s32.totalorder %s70, %s72
    %p76 = scmp.eq.s32.totalorder %s15, 0
    %p77 = por %p75, %p76
    %p78 = scmp.ne.s32.totalorder %s70, %s72
    %p79 = scmp.eq.s32.totalorder %s20, 1
    %p80 = por %p78, %p79
    %p81 = scmp.ne.s32.totalorder %s72, %s73
    %p82 = scmp.eq.s32.totalorder %s20, 0
    %p83 = por %p81, %p82
    %p84 = scmp.ne.s32.totalorder %s72, %s73
    %p85 = scmp.eq.s32.totalorder %s21, 1
    %p86 = por %p84, %p85
    %p88 = scmp.ne.s32.totalorder %s73, %s87
    %p89 = scmp.eq.s32.totalorder %s21, 0
    %p90 = por %p88, %p89
    %s92 = sadd.s32 %s91, 1
    %p95 = scmp.eq.s32.totalorder %s15, 1
    %p96 = scmp.ne.s32.totalorder %s91, %s93
    %p97 = scmp.eq.s32.totalorder %s15, 0
    %p98 = por %p96, %p97
    %p99 = scmp.ne.s32.totalorder %s91, %s93
    %p100 = scmp.eq.s32.totalorder %s20, 1
    %p101 = por %p99, %p100
    %p102 = scmp.ne.s32.totalorder %s93, %s94
    %p103 = scmp.eq.s32.totalorder %s20, 0
    %p104 = por %p102, %p103
    %p105 = scmp.ne.s32.totalorder %s93, %s94
    %p106 = scmp.eq.s32.totalorder %s21, 1
    %p107 = por %p105, %p106
    %p109 = scmp.ne.s32.totalorder %s94, %s108
    %p110 = scmp.eq.s32.totalorder %s21, 0
    %p111 = por %p109, %p110
    %s113 = sadd.s32 %s112, 1
    %p116 = scmp.eq.s32.totalorder %s15, 1
    %p117 = scmp.ne.s32.totalorder %s112, %s114
    %p118 = scmp.eq.s32.totalorder %s15, 0
    %p119 = por %p117, %p118
    %p120 = scmp.ne.s32.totalorder %s112, %s114
    %p121 = scmp.eq.s32.totalorder %s20, 1
    %p122 = por %p120, %p121
    %p123 = scmp.ne.s32.totalorder %s114, %s115
    %p124 = scmp.eq.s32.totalorder %s20, 0
    %p125 = por %p123, %p124
    %p126 = scmp.ne.s32.totalorder %s114, %s115
    %p127 = scmp.eq.s32.totalorder %s21, 1
    %p128 = por %p126, %p127
    %p130 = scmp.ne.s32.totalorder %s115, %s129
    %p131 = scmp.eq.s32.totalorder %s21, 0
    %p132 = por %p130, %p131
    %s134 = sadd.s32 %s133, 1
    %p137 = scmp.eq.s32.totalorder %s15, 1
    %p138 = scmp.ne.s32.totalorder %s133, %s135
    %p139 = scmp.eq.s32.totalorder %s15, 0
    %p140 = por %p138, %p139
    %p141 = scmp.ne.s32.totalorder %s133, %s135
    %p142 = scmp.eq.s32.totalorder %s20, 1
    %p143 = por %p141, %p142
    %p144 = scmp.ne.s32.totalorder %s135, %s136
    %p145 = scmp.eq.s32.totalorder %s20, 0
    %p146 = por %p144, %p145
    %p147 = scmp.ne.s32.totalorder %s135, %s136
    %p148 = scmp.eq.s32.totalorder %s21, 1
    %p149 = por %p147, %p148
    %p151 = scmp.ne.s32.totalorder %s136, %s150
    %p152 = scmp.eq.s32.totalorder %s21, 0
    %p153 = por %p151, %p152
    %s155 = sadd.s32 %s154, 1
    %p158 = scmp.eq.s32.totalorder %s15, 1
    %p159 = scmp.ne.s32.totalorder %s154, %s156
    %p160 = scmp.eq.s32.totalorder %s15, 0
    %p161 = por %p159, %p160
    %p162 = scmp.ne.s32.totalorder %s154, %s156
    %p163 = scmp.eq.s32.totalorder %s20, 1
    %p164 = por %p162, %p163
    %p165 = scmp.ne.s32.totalorder %s156, %s157
    %p166 = scmp.eq.s32.totalorder %s20, 0
    %p167 = por %p165, %p166
    %p168 = scmp.ne.s32.totalorder %s156, %s157
    %p169 = scmp.eq.s32.totalorder %s21, 1
    %p170 = por %p168, %p169
    %p172 = scmp.ne.s32.totalorder %s157, %s171
    %p173 = scmp.eq.s32.totalorder %s21, 0
    %p174 = por %p172, %p173
    %s175 = ssub.s32 %s15, %s22
    %p176 = scmp.eq.s32.totalorder %s175, 0
    %s178 = sadd.s32 %s177, 1
    %s179 = scalar_select %p176, %s177, %s178
    %p182 = pneg %p176
    %p183 = scmp.eq.s32.totalorder %s15, 1
    %p184 = por %p182, %p183
    %p185 = scmp.ne.s32.totalorder %s177, %s180
    %p186 = scmp.eq.s32.totalorder %s15, 0
    %p187 = por %p185, %p186
    %p188 = scmp.ne.s32.totalorder %s177, %s180
    %p189 = scmp.eq.s32.totalorder %s20, 1
    %p190 = por %p188, %p189
    %p191 = scmp.ne.s32.totalorder %s180, %s181
    %p192 = scmp.eq.s32.totalorder %s20, 0
    %p193 = por %p191, %p192
    %p194 = scmp.ne.s32.totalorder %s180, %s181
    %p195 = scmp.eq.s32.totalorder %s21, 1
    %p196 = por %p194, %p195
    %p198 = scmp.ne.s32.totalorder %s181, %s197
    %p199 = scmp.eq.s32.totalorder %s21, 0
    %p200 = por %p198, %p199
    %s201 = ssub.s32 %s15, %s22
    %p202 = scmp.eq.s32.totalorder %s201, 0
    %s204 = sadd.s32 %s203, 1
    %s205 = scalar_select %p202, %s203, %s204
    %p208 = pneg %p202
    %p209 = scmp.eq.s32.totalorder %s15, 1
    %p210 = por %p208, %p209
    %p211 = scmp.ne.s32.totalorder %s203, %s206
    %p212 = scmp.eq.s32.totalorder %s15, 0
    %p213 = por %p211, %p212
    %p214 = scmp.ne.s32.totalorder %s203, %s206
    %p215 = scmp.eq.s32.totalorder %s20, 1
    %p216 = por %p214, %p215
    %p217 = scmp.ne.s32.totalorder %s206, %s207
    %p218 = scmp.eq.s32.totalorder %s20, 0
    %p219 = por %p217, %p218
    %p220 = scmp.ne.s32.totalorder %s206, %s207
    %p221 = scmp.eq.s32.totalorder %s21, 1
    %p222 = por %p220, %p221
    %p224 = scmp.ne.s32.totalorder %s207, %s223
    %p225 = scmp.eq.s32.totalorder %s21, 0
    %p226 = por %p224, %p225
    %p227 = scmp.le.s32.totalorder 1, %s15
    %p228 = scmp.lt.s32.totalorder %s15, 3
    %p229 = pnand %p227, %p228
    %p230 = pneg %p229
    // Predicated region
    $region9: #{gradcam_forward.2} parent=5 // pred_check
      _
    $region10: #{gradcam_forward.2} parent=5 // pred_check_branch
      %232 = sbr.rel (%p229) target = $region12
    $region11: #{gradcam_forward.2} parent=5 // pred_region
      %s233 = ssub.s32 %s15, 1
      // Predicated region
      $region13: #{gradcam_forward.2} parent=11 // pred_check
        %p234 = pneg %p62
      $region14: #{gradcam_forward.2} parent=11 // pred_check_branch
        %236 = sbr.rel (%p234) target = $region16
      $region15: #{gradcam_forward.2} parent=11 // pred_region
        _
      $region16: #{gradcam_forward.2} parent=11 // pred_fallthru
        _
      // Predicated region
      $region17: #{gradcam_forward.2} parent=11 // pred_check
        %p237 = pneg %p83
      $region18: #{gradcam_forward.2} parent=11 // pred_check_branch
        %239 = sbr.rel (%p237) target = $region20
      $region19: #{gradcam_forward.2} parent=11 // pred_region
        _
      $region20: #{gradcam_forward.2} parent=11 // pred_fallthru
        _
      // Predicated region
      $region21: #{gradcam_forward.2} parent=11 // pred_check
        %p240 = pneg %p104
      $region22: #{gradcam_forward.2} parent=11 // pred_check_branch
        %242 = sbr.rel (%p240) target = $region24
      $region23: #{gradcam_forward.2} parent=11 // pred_region
        _
      $region24: #{gradcam_forward.2} parent=11 // pred_fallthru
        _
      // Predicated region
      $region25: #{gradcam_forward.2} parent=11 // pred_check
        %p243 = pneg %p125
      $region26: #{gradcam_forward.2} parent=11 // pred_check_branch
        %245 = sbr.rel (%p243) target = $region28
      $region27: #{gradcam_forward.2} parent=11 // pred_region
        _
      $region28: #{gradcam_forward.2} parent=11 // pred_fallthru
        _
      // Predicated region
      $region29: #{gradcam_forward.2} parent=11 // pred_check
        %p246 = pneg %p146
      $region30: #{gradcam_forward.2} parent=11 // pred_check_branch
        %248 = sbr.rel (%p246) target = $region32
      $region31: #{gradcam_forward.2} parent=11 // pred_region
        _
      $region32: #{gradcam_forward.2} parent=11 // pred_fallthru
        _
      // Predicated region
      $region33: #{gradcam_forward.2} parent=11 // pred_check
        %p249 = pneg %p167
      $region34: #{gradcam_forward.2} parent=11 // pred_check_branch
        %251 = sbr.rel (%p249) target = $region36
      $region35: #{gradcam_forward.2} parent=11 // pred_region
        _
      $region36: #{gradcam_forward.2} parent=11 // pred_fallthru
        _
    $region12: #{gradcam_forward.2} parent=5 // pred_fallthru
      _
    %p252 = scmp.lt.s32.totalorder %s15, 2
    // Predicated region
    $region37: #{gradcam_forward.2} parent=5 // pred_check
      %p253 = pneg %p252
    $region38: #{gradcam_forward.2} parent=5 // pred_check_branch
      %255 = sbr.rel (%p253) target = $region40
    $region39: #{gradcam_forward.2} parent=5 // pred_region
      // Predicated region
      $region41: #{gradcam_forward.2} parent=39 // pred_check
        %p256 = pneg %p35
      $region42: #{gradcam_forward.2} parent=39 // pred_check_branch
        %258 = sbr.rel (%p256) target = $region44
      $region43: #{gradcam_forward.2} parent=39 // pred_region
        %p259 = scmp.lt.s32.totalorder %s15, 1
        %s260 = scalar_select %p259, %s15, 1
        %s261 = smul.addr %s260, 3
        %s262 = smul.addr %s261, 8
        %s263 = scalar_lea.vmem %s0, %s262
      $region44: #{gradcam_forward.2} parent=39 // pred_fallthru
        _
    $region40: #{gradcam_forward.2} parent=5 // pred_fallthru
      _
    %p264 = scmp.le.s32.totalorder 1, %s15
    %p265 = scmp.lt.s32.totalorder %s15, 3
    %p266 = pnand %p264, %p265
    %p267 = pneg %p266
    // Predicated region
    $region45: #{gradcam_forward.2} parent=5 // pred_check
      _
    $region46: #{gradcam_forward.2} parent=5 // pred_check_branch
      %269 = sbr.rel (%p266) target = $region48
    $region47: #{gradcam_forward.2} parent=5 // pred_region
      %s270 = ssub.s32 %s15, 1
      %p271 = scmp.lt.s32.totalorder %s20, 1
      %s272 = scalar_select %p271, %s20, 1
      %s273 = smul.addr %s272, 3
      %s274 = smul.addr %s273, 8
      %s275 = scalar_lea.vmem %s0, %s274
      %p276 = pneg %p41
      %p277 = pneg %p38
      %p278 = pneg %p62
      %p279 = pneg %p59
      %p280 = pneg %p83
      %p281 = pneg %p80
      %p282 = pneg %p104
      %p283 = pneg %p101
      %p284 = pneg %p125
      %p285 = pneg %p122
      %p286 = pneg %p146
      %p287 = pneg %p143
      %p288 = pneg %p167
      %p289 = pneg %p164
      %p290 = pneg %p193
      %p291 = pneg %p190
      %p292 = scmp.lt.s32.totalorder %s20, 1
      %s293 = scalar_select %p292, %s20, 1
      %s294 = smul.addr %s293, 2
      %s295 = smul.addr %s294, 8
      %s296 = scalar_lea.vmem %s7, %s295
      %p297 = pneg %p219
      %p298 = pneg %p216
      %p299 = scmp.lt.s32.totalorder %s20, 1
      %s300 = scalar_select %p299, %s20, 1
      %s301 = scalar_lea.vmem %s8, %s300
      %p302 = scmp.lt.s32.totalorder %s20, 1
      %s303 = scalar_select %p302, %s20, 1
      %s304 = smul.addr %s303, 3
      %s305 = smul.addr %s304, 8
      %s306 = scalar_lea.vmem %s0, %s305
      %p307 = scmp.lt.s32.totalorder %s20, 1
      %s308 = scalar_select %p307, %s20, 1
      %s309 = smul.addr %s308, 2
      %s310 = smul.addr %s309, 8
      %s311 = scalar_lea.vmem %s7, %s310
      %p312 = scmp.lt.s32.totalorder %s20, 1
      %s313 = scalar_select %p312, %s20, 1
      %s314 = scalar_lea.vmem %s8, %s313
      %v316 = vld [vmem:[%s306] sm:$0xff]
      %v317 = vld [vmem:[%s306 + $0x8] sm:$0xff]
      %v318 = vld [vmem:[%s306 + $0x10] sm:$0x3]
      %v319 = vld [vmem:[%s2] sm:$0x1]
      %v321 = vlaneseq
      %v322 = vshrl.u32 %v321, 7
      %v323 = vsub.s32 0, %v322
      %v324 = vrot.slane %v319, %v323
      %v326 = vadd.f32 %v324, 0.0
      %v327 = vpack.c.bf16 %v317, %v316
      %v328 = vld [vmem:[%s1] sm:$0xf]
      %v329 = vld [vmem:[%s1 + $0x4] sm:$0xf]
      %v330 = vld [vmem:[%s1 + $0x8] sm:$0xf]
      %v331 = vld [vmem:[%s1 + $0xc] sm:$0xf]
      %v332 = vld [vmem:[%s1 + $0x10] sm:$0xf]
      %v333 = vld [vmem:[%s1 + $0x14] sm:$0xf]
      %v340 = vunpack.c.l.b16 %v328
      %v341 = vunpack.c.l.b16 %v329
      %v342 = vunpack.c.l.b16 %v330
      %v343 = vunpack.c.l.b16 %v331
      %v344 = vunpack.c.l.b16 %v332
      %v345 = vunpack.c.l.b16 %v333
      %v346 = vpack.c.b16 %v341, %v340
      %v347 = vpack.c.b16 %v343, %v342
      %v348 = vpack.c.b16 %v345, %v344
      %vm352 = vcmask 392192
      %v354 = vsel %vm352, %v327, 0
      %356 = vmatprep.subr.bf16.mxu0 0
      %357 = vmatpush1.bf16.msra.mxu0 %v346
      %358 = vmatprep.subr.bf16.mxu0 0
      %359 = vmatpush1.bf16.msra.mxu0 %v347
      %360 = vmatprep.subr.bf16.mxu0 0
      %361 = vmatpush1.bf16.msra.mxu0 %v348
      %362 = vmatprep.subr.bf16.mxu0 0
      %363 = vmatpush1.bf16.msra.mxu0 0
      %364 = vmatprep.subr.bf16.mxu0 0
      %365 = vmatpush1.bf16.msra.mxu0 0
      %366 = vmatprep.subr.bf16.mxu0 0
      %367 = vmatpush1.bf16.msra.mxu0 0
      %368 = vmatprep.subr.bf16.mxu0 0
      %369 = vmatpush1.bf16.msra.mxu0 0
      %370 = vmatprep.subr.bf16.mxu0 0
      %371 = vmatpush1.bf16.msra.mxu0 0
      %372 = vmatprep.subr.bf16.mxu0 0
      %373 = vmatpush1.bf16.msra.mxu0 0
      %374 = vmatprep.subr.bf16.mxu0 0
      %375 = vmatpush1.bf16.msra.mxu0 0
      %376 = vmatprep.subr.bf16.mxu0 0
      %377 = vmatpush1.bf16.msra.mxu0 0
      %378 = vmatprep.subr.bf16.mxu0 0
      %379 = vmatpush1.bf16.msra.mxu0 0
      %380 = vmatprep.subr.bf16.mxu0 0
      %381 = vmatpush1.bf16.msra.mxu0 0
      %382 = vmatprep.subr.bf16.mxu0 0
      %383 = vmatpush1.bf16.msra.mxu0 0
      %384 = vmatprep.subr.bf16.mxu0 0
      %385 = vmatpush1.bf16.msra.mxu0 0
      %386 = vmatprep.subr.bf16.mxu0 0
      %387 = vmatpush1.bf16.msra.mxu0 0
      %388 = vmatprep.mubr.bf16.mxu0 0
      %389 = vmatmul.mubr.bf16.gmra.mrb[0].mxu0 %v354
      %v390 = vpop.f32.mrb[0].mxu0
      %v391 = vadd.f32 0.0, %v390
      %v392 = vpop.f32.mrb[0].mxu0
      %v393 = vpop.f32.mrb[0].mxu0
      %v394 = vadd.f32 0.0, %v393
      %v395 = vpop.f32.mrb[0].mxu0
      %396 = vdwg.mxu0
      %v397 = vadd.f32 %v326, %v391
      %v398 = vadd.f32 %v326, %v394
      %v399 = vpack.c.bf16 %v318, %v318
      %s400 = scalar_lea.vmem %s1, 24
      %v401 = vld [vmem:[%s400] sm:$0xf]
      %v402 = vld [vmem:[%s400 + $0x4] sm:$0xf]
      %v403 = vld [vmem:[%s400 + $0x8] sm:$0xf]
      %v404 = vld [vmem:[%s400 + $0xc] sm:$0xf]
      %v405 = vld [vmem:[%s400 + $0x10] sm:$0xf]
      %v406 = vld [vmem:[%s400 + $0x14] sm:$0xf]
      %vm407 = vsmask.f32 7424
      %v408 = vshrl.u32 %v327, 16
      %v410 = vshll.u32 %v327, 16
      %v412 = vrot.slane %v410, 1
      %v413 = vor.u32 %v408, %v412
      %v415 = vshll.u32 %v399, 16
      %v417 = vrot.slane %v415, 1
      %v418 = vsel %vm407, %v413, %v417
      %v425 = vunpack.c.l.b16 %v401
      %v426 = vunpack.c.l.b16 %v402
      %v427 = vunpack.c.l.b16 %v403
      %v428 = vunpack.c.l.b16 %v404
      %v429 = vunpack.c.l.b16 %v405
      %v430 = vunpack.c.l.b16 %v406
      %v431 = vpack.c.b16 %v426, %v425
      %v432 = vpack.c.b16 %v428, %v427
      %v433 = vpack.c.b16 %v430, %v429
      %v438 = vsel %vm352, %v418, 0
      %440 = vmatprep.subr.bf16.mxu0 0
      %441 = vmatpush1.bf16.msra.mxu0 %v431
      %442 = vmatprep.subr.bf16.mxu0 0
      %443 = vmatpush1.bf16.msra.mxu0 %v432
      %444 = vmatprep.subr.bf16.mxu0 0
      %445 = vmatpush1.bf16.msra.mxu0 %v433
      %446 = vmatprep.subr.bf16.mxu0 0
      %447 = vmatpush1.bf16.msra.mxu0 0
      %448 = vmatprep.subr.bf16.mxu0 0
      %449 = vmatpush1.bf16.msra.mxu0 0
      %450 = vmatprep.subr.bf16.mxu0 0
      %451 = vmatpush1.bf16.msra.mxu0 0
      %452 = vmatprep.subr.bf16.mxu0 0
      %453 = vmatpush1.bf16.msra.mxu0 0
      %454 = vmatprep.subr.bf16.mxu0 0
      %455 = vmatpush1.bf16.msra.mxu0 0
      %456 = vmatprep.subr.bf16.mxu0 0
      %457 = vmatpush1.bf16.msra.mxu0 0
      %458 = vmatprep.subr.bf16.mxu0 0
      %459 = vmatpush1.bf16.msra.mxu0 0
      %460 = vmatprep.subr.bf16.mxu0 0
      %461 = vmatpush1.bf16.msra.mxu0 0
      %462 = vmatprep.subr.bf16.mxu0 0
      %463 = vmatpush1.bf16.msra.mxu0 0
      %464 = vmatprep.subr.bf16.mxu0 0
      %465 = vmatpush1.bf16.msra.mxu0 0
      %466 = vmatprep.subr.bf16.mxu0 0
      %467 = vmatpush1.bf16.msra.mxu0 0
      %468 = vmatprep.subr.bf16.mxu0 0
      %469 = vmatpush1.bf16.msra.mxu0 0
      %470 = vmatprep.subr.bf16.mxu0 0
      %471 = vmatpush1.bf16.msra.mxu0 0
      %472 = vmatprep.mubr.bf16.mxu0 0
      %473 = vmatmul.mubr.bf16.gmra.mrb[0].mxu0 %v438
      %v474 = vpop.f32.mrb[0].mxu0
      %v475 = vadd.f32 0.0, %v474
      %v476 = vpop.f32.mrb[0].mxu0
      %v477 = vpop.f32.mrb[0].mxu0
      %v478 = vadd.f32 0.0, %v477
      %v479 = vpop.f32.mrb[0].mxu0
      %480 = vdwg.mxu0
      %v481 = vadd.f32 %v397, %v475
      %v482 = vadd.f32 %v398, %v478
      %s483 = scalar_lea.vmem %s1, 48
      %v484 = vld [vmem:[%s483] sm:$0xf]
      %v485 = vld [vmem:[%s483 + $0x4] sm:$0xf]
      %v486 = vld [vmem:[%s483 + $0x8] sm:$0xf]
      %v487 = vld [vmem:[%s483 + $0xc] sm:$0xf]
      %v488 = vld [vmem:[%s483 + $0x10] sm:$0xf]
      %v489 = vld [vmem:[%s483 + $0x14] sm:$0xf]
      %vm492 = vcmask 1046528
      %v493 = vrot.slane %v327, 1
      %v494 = vrot.slane %v399, 1
      %v495 = vsel %vm492, %v493, %v494
      %v502 = vunpack.c.l.b16 %v484
      %v503 = vunpack.c.l.b16 %v485
      %v504 = vunpack.c.l.b16 %v486
      %v505 = vunpack.c.l.b16 %v487
      %v506 = vunpack.c.l.b16 %v488
      %v507 = vunpack.c.l.b16 %v489
      %v508 = vpack.c.b16 %v503, %v502
      %v509 = vpack.c.b16 %v505, %v504
      %v510 = vpack.c.b16 %v507, %v506
      %v515 = vsel %vm352, %v495, 0
      %517 = vmatprep.subr.bf16.mxu0 0
      %518 = vmatpush1.bf16.msra.mxu0 %v508
      %519 = vmatprep.subr.bf16.mxu0 0
      %520 = vmatpush1.bf16.msra.mxu0 %v509
      %521 = vmatprep.subr.bf16.mxu0 0
      %522 = vmatpush1.bf16.msra.mxu0 %v510
      %523 = vmatprep.subr.bf16.mxu0 0
      %524 = vmatpush1.bf16.msra.mxu0 0
      %525 = vmatprep.subr.bf16.mxu0 0
      %526 = vmatpush1.bf16.msra.mxu0 0
      %527 = vmatprep.subr.bf16.mxu0 0
      %528 = vmatpush1.bf16.msra.mxu0 0
      %529 = vmatprep.subr.bf16.mxu0 0
      %530 = vmatpush1.bf16.msra.mxu0 0
      %531 = vmatprep.subr.bf16.mxu0 0
      %532 = vmatpush1.bf16.msra.mxu0 0
      %533 = vmatprep.subr.bf16.mxu0 0
      %534 = vmatpush1.bf16.msra.mxu0 0
      %535 = vmatprep.subr.bf16.mxu0 0
      %536 = vmatpush1.bf16.msra.mxu0 0
      %537 = vmatprep.subr.bf16.mxu0 0
      %538 = vmatpush1.bf16.msra.mxu0 0
      %539 = vmatprep.subr.bf16.mxu0 0
      %540 = vmatpush1.bf16.msra.mxu0 0
      %541 = vmatprep.subr.bf16.mxu0 0
      %542 = vmatpush1.bf16.msra.mxu0 0
      %543 = vmatprep.subr.bf16.mxu0 0
      %544 = vmatpush1.bf16.msra.mxu0 0
      %545 = vmatprep.subr.bf16.mxu0 0
      %546 = vmatpush1.bf16.msra.mxu0 0
      %547 = vmatprep.subr.bf16.mxu0 0
      %548 = vmatpush1.bf16.msra.mxu0 0
      %549 = vmatprep.mubr.bf16.mxu0 0
      %550 = vmatmul.mubr.bf16.gmra.mrb[0].mxu0 %v515
      %v551 = vpop.f32.mrb[0].mxu0
      %v552 = vadd.f32 0.0, %v551
      %v553 = vpop.f32.mrb[0].mxu0
      %v554 = vpop.f32.mrb[0].mxu0
      %v555 = vadd.f32 0.0, %v554
      %v556 = vpop.f32.mrb[0].mxu0
      %557 = vdwg.mxu0
      %v558 = vadd.f32 %v481, %v552
      %v559 = vadd.f32 %v482, %v555
      %v560 = vmax.f32 %v558, 0.0
      %v561 = vmax.f32 %v559, 0.0
      %562 = vst [vmem:[#allocation2] sm:$0x1] 0.0
      %563 = vst [vmem:[#allocation2 + $0x11] sm:$0x1] 0.0
      %564 = vst [vmem:[#allocation2 + $0x1] sm:$0xff] %v560
      %565 = vst [vmem:[#allocation2 + $0x9] sm:$0xff] %v561
      %v566 = vld [vmem:[#allocation2] sm:$0xff]
      %v567 = vld [vmem:[#allocation2 + $0x8] sm:$0xff]
      %v568 = vld [vmem:[#allocation2 + $0x10] sm:$0x3]
      %v569 = vld [vmem:[%s4] sm:$0x1]
      %v571 = vlaneseq
      %v572 = vshrl.u32 %v571, 7
      %v573 = vsub.s32 0, %v572
      %v574 = vrot.slane %v569, %v573
      %v576 = vadd.f32 %v574, 0.0
      %v577 = vpack.c.bf16 %v567, %v566
      %v578 = vld [vmem:[%s3] sm:$0xf]
      %v579 = vld [vmem:[%s3 + $0x4] sm:$0xf]
      %v580 = vld [vmem:[%s3 + $0x8] sm:$0xf]
      %v581 = vld [vmem:[%s3 + $0xc] sm:$0xf]
      %v582 = vld [vmem:[%s3 + $0x10] sm:$0xf]
      %v583 = vld [vmem:[%s3 + $0x14] sm:$0xf]
      %v584 = vld [vmem:[%s3 + $0x18] sm:$0xf]
      %v585 = vld [vmem:[%s3 + $0x1c] sm:$0xf]
      %v586 = vld [vmem:[%s3 + $0x20] sm:$0xf]
      %v587 = vld [vmem:[%s3 + $0x24] sm:$0xf]
      %v588 = vld [vmem:[%s3 + $0x28] sm:$0xf]
      %v589 = vld [vmem:[%s3 + $0x2c] sm:$0xf]
      %v590 = vld [vmem:[%s3 + $0x30] sm:$0xf]
      %v591 = vld [vmem:[%s3 + $0x34] sm:$0xf]
      %v592 = vld [vmem:[%s3 + $0x38] sm:$0xf]
      %v593 = vld [vmem:[%s3 + $0x3c] sm:$0xf]
      %v610 = vunpack.c.l.b16 %v578
      %v611 = vunpack.c.l.b16 %v579
      %v612 = vunpack.c.l.b16 %v580
      %v613 = vunpack.c.l.b16 %v581
      %v614 = vunpack.c.l.b16 %v582
      %v615 = vunpack.c.l.b16 %v583
      %v616 = vunpack.c.l.b16 %v584
      %v617 = vunpack.c.l.b16 %v585
      %v618 = vunpack.c.l.b16 %v586
      %v619 = vunpack.c.l.b16 %v587
      %v620 = vunpack.c.l.b16 %v588
      %v621 = vunpack.c.l.b16 %v589
      %v622 = vunpack.c.l.b16 %v590
      %v623 = vunpack.c.l.b16 %v591
      %v624 = vunpack.c.l.b16 %v592
      %v625 = vunpack.c.l.b16 %v593
      %v626 = vpack.c.b16 %v611, %v610
      %v627 = vpack.c.b16 %v613, %v612
      %v628 = vpack.c.b16 %v615, %v614
      %v629 = vpack.c.b16 %v617, %v616
      %v630 = vpack.c.b16 %v619, %v618
      %v631 = vpack.c.b16 %v621, %v620
      %v632 = vpack.c.b16 %v623, %v622
      %v633 = vpack.c.b16 %v625, %v624
      %642 = vmatprep.subr.bf16.mxu0 0
      %643 = vmatpush1.bf16.msra.mxu0 %v626
      %644 = vmatprep.subr.bf16.mxu0 0
      %645 = vmatpush1.bf16.msra.mxu0 %v627
      %646 = vmatprep.subr.bf16.mxu0 0
      %647 = vmatpush1.bf16.msra.mxu0 %v628
      %648 = vmatprep.subr.bf16.mxu0 0
      %649 = vmatpush1.bf16.msra.mxu0 %v629
      %650 = vmatprep.subr.bf16.mxu0 0
      %651 = vmatpush1.bf16.msra.mxu0 %v630
      %652 = vmatprep.subr.bf16.mxu0 0
      %653 = vmatpush1.bf16.msra.mxu0 %v631
      %654 = vmatprep.subr.bf16.mxu0 0
      %655 = vmatpush1.bf16.msra.mxu0 %v632
      %656 = vmatprep.subr.bf16.mxu0 0
      %657 = vmatpush1.bf16.msra.mxu0 %v633
      %658 = vmatprep.subr.bf16.mxu0 0
      %659 = vmatpush1.bf16.msra.mxu0 0
      %660 = vmatprep.subr.bf16.mxu0 0
      %661 = vmatpush1.bf16.msra.mxu0 0
      %662 = vmatprep.subr.bf16.mxu0 0
      %663 = vmatpush1.bf16.msra.mxu0 0
      %664 = vmatprep.subr.bf16.mxu0 0
      %665 = vmatpush1.bf16.msra.mxu0 0
      %666 = vmatprep.subr.bf16.mxu0 0
      %667 = vmatpush1.bf16.msra.mxu0 0
      %668 = vmatprep.subr.bf16.mxu0 0
      %669 = vmatpush1.bf16.msra.mxu0 0
      %670 = vmatprep.subr.bf16.mxu0 0
      %671 = vmatpush1.bf16.msra.mxu0 0
      %672 = vmatprep.subr.bf16.mxu0 0
      %673 = vmatpush1.bf16.msra.mxu0 0
      %674 = vmatprep.mubr.bf16.mxu0 0
      %675 = vmatmul.mubr.bf16.gmra.mrb[0].mxu0 %v577
      %v676 = vpop.f32.mrb[0].mxu0
      %v677 = vadd.f32 0.0, %v676
      %v678 = vpop.f32.mrb[0].mxu0
      %v679 = vpop.f32.mrb[0].mxu0
      %v680 = vadd.f32 0.0, %v679
      %v681 = vpop.f32.mrb[0].mxu0
      %682 = vdwg.mxu0
      %v683 = vadd.f32 %v576, %v677
      %v684 = vadd.f32 %v576, %v680
      %v685 = vpack.c.bf16 %v568, %v568
      %s686 = scalar_lea.vmem %s3, 64
      %v687 = vld [vmem:[%s686] sm:$0xf]
      %v688 = vld [vmem:[%s686 + $0x4] sm:$0xf]
      %v689 = vld [vmem:[%s686 + $0x8] sm:$0xf]
      %v690 = vld [vmem:[%s686 + $0xc] sm:$0xf]
      %v691 = vld [vmem:[%s686 + $0x10] sm:$0xf]
      %v692 = vld [vmem:[%s686 + $0x14] sm:$0xf]
      %v693 = vld [vmem:[%s686 + $0x18] sm:$0xf]
      %v694 = vld [vmem:[%s686 + $0x1c] sm:$0xf]
      %v695 = vld [vmem:[%s686 + $0x20] sm:$0xf]
      %v696 = vld [vmem:[%s686 + $0x24] sm:$0xf]
      %v697 = vld [vmem:[%s686 + $0x28] sm:$0xf]
      %v698 = vld [vmem:[%s686 + $0x2c] sm:$0xf]
      %v699 = vld [vmem:[%s686 + $0x30] sm:$0xf]
      %v700 = vld [vmem:[%s686 + $0x34] sm:$0xf]
      %v701 = vld [vmem:[%s686 + $0x38] sm:$0xf]
      %v702 = vld [vmem:[%s686 + $0x3c] sm:$0xf]
      %v704 = vshrl.u32 %v577, 16
      %v706 = vshll.u32 %v577, 16
      %v708 = vrot.slane %v706, 1
      %v709 = vor.u32 %v704, %v708
      %v711 = vshll.u32 %v685, 16
      %v713 = vrot.slane %v711, 1
      %v714 = vsel %vm407, %v709, %v713
      %v732 = vunpack.c.l.b16 %v687
      %v733 = vunpack.c.l.b16 %v688
      %v734 = vunpack.c.l.b16 %v689
      %v735 = vunpack.c.l.b16 %v690
      %v736 = vunpack.c.l.b16 %v691
      %v737 = vunpack.c.l.b16 %v692
      %v738 = vunpack.c.l.b16 %v693
      %v739 = vunpack.c.l.b16 %v694
      %v740 = vunpack.c.l.b16 %v695
      %v741 = vunpack.c.l.b16 %v696
      %v742 = vunpack.c.l.b16 %v697
      %v743 = vunpack.c.l.b16 %v698
      %v744 = vunpack.c.l.b16 %v699
      %v745 = vunpack.c.l.b16 %v700
      %v746 = vunpack.c.l.b16 %v701
      %v747 = vunpack.c.l.b16 %v702
      %v748 = vpack.c.b16 %v733, %v732
      %v749 = vpack.c.b16 %v735, %v734
      %v750 = vpack.c.b16 %v737, %v736
      %v751 = vpack.c.b16 %v739, %v738
      %v752 = vpack.c.b16 %v741, %v740
      %v753 = vpack.c.b16 %v743, %v742
      %v754 = vpack.c.b16 %v745, %v744
      %v755 = vpack.c.b16 %v747, %v746
      %764 = vmatprep.subr.bf16.mxu0 0
      %765 = vmatpush1.bf16.msra.mxu0 %v748
      %766 = vmatprep.subr.bf16.mxu0 0
      %767 = vmatpush1.bf16.msra.mxu0 %v749
      %768 = vmatprep.subr.bf16.mxu0 0
      %769 = vmatpush1.bf16.msra.mxu0 %v750
      %770 = vmatprep.subr.bf16.mxu0 0
      %771 = vmatpush1.bf16.msra.mxu0 %v751
      %772 = vmatprep.subr.bf16.mxu0 0
      %773 = vmatpush1.bf16.msra.mxu0 %v752
      %774 = vmatprep.subr.bf16.mxu0 0
      %775 = vmatpush1.bf16.msra.mxu0 %v753
      %776 = vmatprep.subr.bf16.mxu0 0
      %777 = vmatpush1.bf16.msra.mxu0 %v754
      %778 = vmatprep.subr.bf16.mxu0 0
      %779 = vmatpush1.bf16.msra.mxu0 %v755
      %780 = vmatprep.subr.bf16.mxu0 0
      %781 = vmatpush1.bf16.msra.mxu0 0
      %782 = vmatprep.subr.bf16.mxu0 0
      %783 = vmatpush1.bf16.msra.mxu0 0
      %784 = vmatprep.subr.bf16.mxu0 0
      %785 = vmatpush1.bf16.msra.mxu0 0
      %786 = vmatprep.subr.bf16.mxu0 0
      %787 = vmatpush1.bf16.msra.mxu0 0
      %788 = vmatprep.subr.bf16.mxu0 0
      %789 = vmatpush1.bf16.msra.mxu0 0
      %790 = vmatprep.subr.bf16.mxu0 0
      %791 = vmatpush1.bf16.msra.mxu0 0
      %792 = vmatprep.subr.bf16.mxu0 0
      %793 = vmatpush1.bf16.msra.mxu0 0
      %794 = vmatprep.subr.bf16.mxu0 0
      %795 = vmatpush1.bf16.msra.mxu0 0
      %796 = vmatprep.mubr.bf16.mxu0 0
      %797 = vmatmul.mubr.bf16.gmra.mrb[0].mxu0 %v714
      %v798 = vpop.f32.mrb[0].mxu0
      %v799 = vadd.f32 0.0, %v798
      %v800 = vpop.f32.mrb[0].mxu0
      %v801 = vpop.f32.mrb[0].mxu0
      %v802 = vadd.f32 0.0, %v801
      %v803 = vpop.f32.mrb[0].mxu0
      %804 = vdwg.mxu0
      %v805 = vadd.f32 %v683, %v799
      %v806 = vadd.f32 %v684, %v802
      %s807 = scalar_lea.vmem %s3, 128
      %v808 = vld [vmem:[%s807] sm:$0xf]
      %v809 = vld [vmem:[%s807 + $0x4] sm:$0xf]
      %v810 = vld [vmem:[%s807 + $0x8] sm:$0xf]
      %v811 = vld [vmem:[%s807 + $0xc] sm:$0xf]
      %v812 = vld [vmem:[%s807 + $0x10] sm:$0xf]
      %v813 = vld [vmem:[%s807 + $0x14] sm:$0xf]
      %v814 = vld [vmem:[%s807 + $0x18] sm:$0xf]
      %v815 = vld [vmem:[%s807 + $0x1c] sm:$0xf]
      %v816 = vld [vmem:[%s807 + $0x20] sm:$0xf]
      %v817 = vld [vmem:[%s807 + $0x24] sm:$0xf]
      %v818 = vld [vmem:[%s807 + $0x28] sm:$0xf]
      %v819 = vld [vmem:[%s807 + $0x2c] sm:$0xf]
      %v820 = vld [vmem:[%s807 + $0x30] sm:$0xf]
      %v821 = vld [vmem:[%s807 + $0x34] sm:$0xf]
      %v822 = vld [vmem:[%s807 + $0x38] sm:$0xf]
      %v823 = vld [vmem:[%s807 + $0x3c] sm:$0xf]
      %v826 = vrot.slane %v577, 1
      %v827 = vrot.slane %v685, 1
      %v828 = vsel %vm492, %v826, %v827
      %v846 = vunpack.c.l.b16 %v808
      %v847 = vunpack.c.l.b16 %v809
      %v848 = vunpack.c.l.b16 %v810
      %v849 = vunpack.c.l.b16 %v811
      %v850 = vunpack.c.l.b16 %v812
      %v851 = vunpack.c.l.b16 %v813
      %v852 = vunpack.c.l.b16 %v814
      %v853 = vunpack.c.l.b16 %v815
      %v854 = vunpack.c.l.b16 %v816
      %v855 = vunpack.c.l.b16 %v817
      %v856 = vunpack.c.l.b16 %v818
      %v857 = vunpack.c.l.b16 %v819
      %v858 = vunpack.c.l.b16 %v820
      %v859 = vunpack.c.l.b16 %v821
      %v860 = vunpack.c.l.b16 %v822
      %v861 = vunpack.c.l.b16 %v823
      %v862 = vpack.c.b16 %v847, %v846
      %v863 = vpack.c.b16 %v849, %v848
      %v864 = vpack.c.b16 %v851, %v850
      %v865 = vpack.c.b16 %v853, %v852
      %v866 = vpack.c.b16 %v855, %v854
      %v867 = vpack.c.b16 %v857, %v856
      %v868 = vpack.c.b16 %v859, %v858
      %v869 = vpack.c.b16 %v861, %v860
      %878 = vmatprep.subr.bf16.mxu0 0
      %879 = vmatpush1.bf16.msra.mxu0 %v862
      %880 = vmatprep.subr.bf16.mxu0 0
      %881 = vmatpush1.bf16.msra.mxu0 %v863
      %882 = vmatprep.subr.bf16.mxu0 0
      %883 = vmatpush1.bf16.msra.mxu0 %v864
      %884 = vmatprep.subr.bf16.mxu0 0
      %885 = vmatpush1.bf16.msra.mxu0 %v865
      %886 = vmatprep.subr.bf16.mxu0 0
      %887 = vmatpush1.bf16.msra.mxu0 %v866
      %888 = vmatprep.subr.bf16.mxu0 0
      %889 = vmatpush1.bf16.msra.mxu0 %v867
      %890 = vmatprep.subr.bf16.mxu0 0
      %891 = vmatpush1.bf16.msra.mxu0 %v868
      %892 = vmatprep.subr.bf16.mxu0 0
      %893 = vmatpush1.bf16.msra.mxu0 %v869
      %894 = vmatprep.subr.bf16.mxu0 0
      %895 = vmatpush1.bf16.msra.mxu0 0
      %896 = vmatprep.subr.bf16.mxu0 0
      %897 = vmatpush1.bf16.msra.mxu0 0
      %898 = vmatprep.subr.bf16.mxu0 0
      %899 = vmatpush1.bf16.msra.mxu0 0
      %900 = vmatprep.subr.bf16.mxu0 0
      %901 = vmatpush1.bf16.msra.mxu0 0
      %902 = vmatprep.subr.bf16.mxu0 0
      %903 = vmatpush1.bf16.msra.mxu0 0
      %904 = vmatprep.subr.bf16.mxu0 0
      %905 = vmatpush1.bf16.msra.mxu0 0
      %906 = vmatprep.subr.bf16.mxu0 0
      %907 = vmatpush1.bf16.msra.mxu0 0
      %908 = vmatprep.subr.bf16.mxu0 0
      %909 = vmatpush1.bf16.msra.mxu0 0
      %910 = vmatprep.mubr.bf16.mxu0 0
      %911 = vmatmul.mubr.bf16.gmra.mrb[0].mxu0 %v828
      %v912 = vpop.f32.mrb[0].mxu0
      %v913 = vadd.f32 0.0, %v912
      %v914 = vpop.f32.mrb[0].mxu0
      %v915 = vpop.f32.mrb[0].mxu0
      %v916 = vadd.f32 0.0, %v915
      %v917 = vpop.f32.mrb[0].mxu0
      %918 = vdwg.mxu0
      %v919 = vadd.f32 %v805, %v913
      %v920 = vadd.f32 %v806, %v916
      %v921 = vmax.f32 %v919, 0.0
      %v922 = vmax.f32 %v920, 0.0
      %923 = vst [vmem:[%s311] sm:$0xff] %v921
      %924 = vst [vmem:[%s311 + $0x8] sm:$0xff] %v922
      %v925 = vadd.f32 %v921, %v922
      %v926 = vrot.slane %v925, 4
      %v927 = vadd.f32 %v925, %v926
      %v928 = vrot.slane %v927, 2
      %v929 = vadd.f32 %v927, %v928
      %v930 = vrot.slane %v929, 1
      %v931 = vadd.f32 %v929, %v930
      %v932 = vpack.c.bf16 %v931, %v931
      %v933 = vld [vmem:[%s5] sm:$0xf]
      %v934 = vld [vmem:[%s5 + $0x4] sm:$0xf]
      %v935 = vld [vmem:[%s5 + $0x8] sm:$0xf]
      %v936 = vld [vmem:[%s5 + $0xc] sm:$0xf]
      %v937 = vld [vmem:[%s5 + $0x10] sm:$0xf]
      %v938 = vld [vmem:[%s5 + $0x14] sm:$0xf]
      %v939 = vld [vmem:[%s5 + $0x18] sm:$0xf]
      %v940 = vld [vmem:[%s5 + $0x1c] sm:$0xf]
      %v941 = vld [vmem:[%s5 + $0x20] sm:$0xf]
      %v942 = vld [vmem:[%s5 + $0x24] sm:$0xf]
      %v943 = vld [vmem:[%s5 + $0x28] sm:$0xf]
      %v944 = vld [vmem:[%s5 + $0x2c] sm:$0xf]
      %v945 = vld [vmem:[%s5 + $0x30] sm:$0xf]
      %v946 = vld [vmem:[%s5 + $0x34] sm:$0xf]
      %v947 = vld [vmem:[%s5 + $0x38] sm:$0xf]
      %v948 = vld [vmem:[%s5 + $0x3c] sm:$0xf]
      %v949 = vld [vmem:[%s6] sm:$0x1]
      %v966 = vunpack.c.l.b16 %v933
      %v967 = vunpack.c.l.b16 %v934
      %v968 = vunpack.c.l.b16 %v935
      %v969 = vunpack.c.l.b16 %v936
      %v970 = vunpack.c.l.b16 %v937
      %v971 = vunpack.c.l.b16 %v938
      %v972 = vunpack.c.l.b16 %v939
      %v973 = vunpack.c.l.b16 %v940
      %v974 = vunpack.c.l.b16 %v941
      %v975 = vunpack.c.l.b16 %v942
      %v976 = vunpack.c.l.b16 %v943
      %v977 = vunpack.c.l.b16 %v944
      %v978 = vunpack.c.l.b16 %v945
      %v979 = vunpack.c.l.b16 %v946
      %v980 = vunpack.c.l.b16 %v947
      %v981 = vunpack.c.l.b16 %v948
      %v982 = vpack.c.b16 %v967, %v966
      %v983 = vpack.c.b16 %v969, %v968
      %v984 = vpack.c.b16 %v971, %v970
      %v985 = vpack.c.b16 %v973, %v972
      %v986 = vpack.c.b16 %v975, %v974
      %v987 = vpack.c.b16 %v977, %v976
      %v988 = vpack.c.b16 %v979, %v978
      %v989 = vpack.c.b16 %v981, %v980
      %998 = vmatprep.subr.bf16.mxu0 0
      %999 = vmatpush1.bf16.msra.mxu0 %v982
      %1000 = vmatprep.subr.bf16.mxu0 0
      %1001 = vmatpush1.bf16.msra.mxu0 %v983
      %1002 = vmatprep.subr.bf16.mxu0 0
      %1003 = vmatpush1.bf16.msra.mxu0 %v984
      %1004 = vmatprep.subr.bf16.mxu0 0
      %1005 = vmatpush1.bf16.msra.mxu0 %v985
      %1006 = vmatprep.subr.bf16.mxu0 0
      %1007 = vmatpush1.bf16.msra.mxu0 %v986
      %1008 = vmatprep.subr.bf16.mxu0 0
      %1009 = vmatpush1.bf16.msra.mxu0 %v987
      %1010 = vmatprep.subr.bf16.mxu0 0
      %1011 = vmatpush1.bf16.msra.mxu0 %v988
      %1012 = vmatprep.subr.bf16.mxu0 0
      %1013 = vmatpush1.bf16.msra.mxu0 %v989
      %1014 = vmatprep.subr.bf16.mxu0 0
      %1015 = vmatpush1.bf16.msra.mxu0 0
      %1016 = vmatprep.subr.bf16.mxu0 0
      %1017 = vmatpush1.bf16.msra.mxu0 0
      %1018 = vmatprep.subr.bf16.mxu0 0
      %1019 = vmatpush1.bf16.msra.mxu0 0
      %1020 = vmatprep.subr.bf16.mxu0 0
      %1021 = vmatpush1.bf16.msra.mxu0 0
      %1022 = vmatprep.subr.bf16.mxu0 0
      %1023 = vmatpush1.bf16.msra.mxu0 0
      %1024 = vmatprep.subr.bf16.mxu0 0
      %1025 = vmatpush1.bf16.msra.mxu0 0
      %1026 = vmatprep.subr.bf16.mxu0 0
      %1027 = vmatpush1.bf16.msra.mxu0 0
      %1028 = vmatprep.subr.bf16.mxu0 0
      %1029 = vmatpush1.bf16.msra.mxu0 0
      %1030 = vmatprep.mubr.bf16.mxu0 0
      %1031 = vmatmul.mubr.bf16.gmra.mrb[0].mxu0 %v932
      %v1032 = vpop.f32.mrb[0].mxu0
      %v1033 = vadd.f32 %v949, %v1032
      %v1034 = vpop.f32.mrb[0].mxu0
      %v1035 = vpop.f32.mrb[0].mxu0
      %v1036 = vpop.f32.mrb[0].mxu0
      %1037 = vdwg.mxu0
      %vm1038 = vcmask 253952
      %1039 = vst.msk [vmem:[%s314] sm:$0x1] %vm1038, %v1033
      %p1040 = scmp.lt.s32.totalorder %s20, 1
      %s1041 = scalar_select %p1040, %s20, 1
      %s1042 = smul.addr %s1041, 2
      %s1043 = smul.addr %s1042, 8
      %s1044 = scalar_lea.vmem %s7, %s1043
      %p1045 = scmp.lt.s32.totalorder %s20, 1
      %s1046 = scalar_select %p1045, %s20, 1
      %s1047 = scalar_lea.vmem %s8, %s1046
      // Predicated region
      $region49: #{gradcam_forward.2} parent=47 // pred_check
        %p1048 = pneg %p190
      $region50: #{gradcam_forward.2} parent=47 // pred_check_branch
        %1050 = sbr.rel (%p1048) target = $region52
      $region51: #{gradcam_forward.2} parent=47 // pred_region
        _
      $region52: #{gradcam_forward.2} parent=47 // pred_fallthru
        _
      // Predicated region
      $region53: #{gradcam_forward.2} parent=47 // pred_check
        %p1051 = pneg %p216
      $region54: #{gradcam_forward.2} parent=47 // pred_check_branch
        %1053 = sbr.rel (%p1051) target = $region56
      $region55: #{gradcam_forward.2} parent=47 // pred_region
        _
      $region56: #{gradcam_forward.2} parent=47 // pred_fallthru
        _
    $region48: #{gradcam_forward.2} parent=5 // pred_fallthru
      _
    %p1054 = scmp.le.s32.totalorder 2, %s15
    // Predicated region
    $region57: #{gradcam_forward.2} parent=5 // pred_check
      %p1055 = pneg %p1054
    $region58: #{gradcam_forward.2} parent=5 // pred_check_branch
      %1057 = sbr.rel (%p1055) target = $region60
    $region59: #{gradcam_forward.2} parent=5 // pred_region
      %s1058 = ssub.s32 %s15, 2
      // Predicated region
      $region61: #{gradcam_forward.2} parent=59 // pred_check
        %p1059 = pneg %p196
      $region62: #{gradcam_forward.2} parent=59 // pred_check_branch
        %1061 = sbr.rel (%p1059) target = $region64
      $region63: #{gradcam_forward.2} parent=59 // pred_region
        %p1062 = scmp.lt.s32.totalorder %s21, 1
        %s1063 = scalar_select %p1062, %s21, 1
        %s1064 = smul.addr %s1063, 2
        %s1065 = smul.addr %s1064, 8
        %s1066 = scalar_lea.vmem %s7, %s1065
      $region64: #{gradcam_forward.2} parent=59 // pred_fallthru
        _
      // Predicated region
      $region65: #{gradcam_forward.2} parent=59 // pred_check
        %p1067 = pneg %p222
      $region66: #{gradcam_forward.2} parent=59 // pred_check_branch
        %1069 = sbr.rel (%p1067) target = $region68
      $region67: #{gradcam_forward.2} parent=59 // pred_region
        %p1070 = scmp.lt.s32.totalorder %s21, 1
        %s1071 = scalar_select %p1070, %s21, 1
        %s1072 = scalar_lea.vmem %s8, %s1071
      $region68: #{gradcam_forward.2} parent=59 // pred_fallthru
        _
    $region60: #{gradcam_forward.2} parent=5 // pred_fallthru
      _
  $region6: #{gradcam_forward.2} parent=0 // loop_footer
    %s19 = sadd.s32 1, %s15
  $region7: #{gradcam_forward.2} parent=0 // loop_footer_branch
    %14 = sbr.rel target = $region3
  $region8: #{gradcam_forward.2} parent=0 // loop_exit
    _

// kernel: gradcam_forward.3
$region0: #{gradcam_forward.3}
  #allocation0 [shape = 'u32[]', space=smem, size = 0x4, offset = 0x4, fixed_abs, tag = 'smem constant byte address 0x4 - core index']
  #allocation1 [shape = 'u32[144,128]{1,0:T(1,128)}', space=vmem, size = 0x12000, scoped, tag = 'internal scratch']
  #allocation2 [shape = 'f32[18,32]{1,0:T(8,128)}', space=vmem, size = 0x3000, scoped, tag = 'scratch operand']
  %s0 = inlined_call_operand.vmem [shape: f32[18,32], index: 0, kind: input, shape index: {}]
  %s1 = inlined_call_operand.vmem [shape: bf16[32,128], index: 1, kind: input, shape index: {}]
  %s2 = inlined_call_operand.vmem [shape: bf16[32,128], index: 2, kind: input, shape index: {}]
  %s3 = inlined_call_operand.vmem [shape: f32[1,128], index: 3, kind: input, shape index: {}]
  %s4 = inlined_call_operand.vmem [shape: bf16[32,128], index: 4, kind: input, shape index: {}]
  %s5 = inlined_call_operand.vmem [shape: f32[1,128], index: 5, kind: input, shape index: {}]
  %s6 = inlined_call_operand.vmem [shape: f32[18,128], index: 6, kind: output, shape index: {}]
  %s7 = sld [smem:[#allocation0]]
  $region34: #{gradcam_forward.3} parent=0
    _
  %s9 = ssub.s32 1, %s7
  %s10 = scalar_select 0, %s9, %s7
  // Predicated region
  $region2: #{gradcam_forward.3} parent=0 // pred_check
    _
  $region3: #{gradcam_forward.3} parent=0 // pred_check_branch
    %12 = sbr.rel (0) target = $region5
  $region4: #{gradcam_forward.3} parent=0 // pred_region
    _
  $region5: #{gradcam_forward.3} parent=0 // pred_fallthru
    _
  // Predicated region
  $region6: #{gradcam_forward.3} parent=0 // pred_check
    _
  $region7: #{gradcam_forward.3} parent=0 // pred_check_branch
    %14 = sbr.rel (0) target = $region9
  $region8: #{gradcam_forward.3} parent=0 // pred_region
    _
  $region9: #{gradcam_forward.3} parent=0 // pred_fallthru
    _
  // Predicated region
  $region10: #{gradcam_forward.3} parent=0 // pred_check
    _
  $region11: #{gradcam_forward.3} parent=0 // pred_check_branch
    %16 = sbr.rel (0) target = $region13
  $region12: #{gradcam_forward.3} parent=0 // pred_region
    _
  $region13: #{gradcam_forward.3} parent=0 // pred_fallthru
    _
  // Predicated region
  $region14: #{gradcam_forward.3} parent=0 // pred_check
    _
  $region15: #{gradcam_forward.3} parent=0 // pred_check_branch
    %18 = sbr.rel (0) target = $region17
  $region16: #{gradcam_forward.3} parent=0 // pred_region
    _
  $region17: #{gradcam_forward.3} parent=0 // pred_fallthru
    _
  // Predicated region
  $region18: #{gradcam_forward.3} parent=0 // pred_check
    _
  $region19: #{gradcam_forward.3} parent=0 // pred_check_branch
    %20 = sbr.rel (0) target = $region21
  $region20: #{gradcam_forward.3} parent=0 // pred_region
    _
  $region21: #{gradcam_forward.3} parent=0 // pred_fallthru
    _
  // Predicated region
  $region22: #{gradcam_forward.3} parent=0 // pred_check
    _
  $region23: #{gradcam_forward.3} parent=0 // pred_check_branch
    %22 = sbr.rel (0) target = $region25
  $region24: #{gradcam_forward.3} parent=0 // pred_region
    _
  $region25: #{gradcam_forward.3} parent=0 // pred_fallthru
    _
  %v24 = vld [vmem:[%s0] sm:$0xff]
  %v25 = vld [vmem:[%s0 + $0x8] sm:$0xff]
  %v26 = vld [vmem:[%s0 + $0x10] sm:$0x3]
  %v27 = vpack.c.bf16 %v25, %v24
  %v28 = vpack.c.bf16 %v26, %v26
  %v29 = vld [vmem:[%s1] sm:$0xf]
  %v30 = vld [vmem:[%s1 + $0x4] sm:$0xf]
  %v31 = vld [vmem:[%s1 + $0x8] sm:$0xf]
  %v32 = vld [vmem:[%s1 + $0xc] sm:$0xf]
  %v33 = vld [vmem:[%s3] sm:$0x1]
  %v35 = vlaneseq
  %v36 = vshrl.u32 %v35, 7
  %v37 = vsub.s32 0, %v36
  %v38 = vrot.slane %v33, %v37
  %v44 = vunpack.c.l.b16 %v29
  %v45 = vunpack.c.l.b16 %v30
  %v46 = vunpack.c.l.b16 %v31
  %v47 = vunpack.c.l.b16 %v32
  %v48 = vpack.c.b16 %v45, %v44
  %v49 = vpack.c.b16 %v47, %v46
  %vm52 = vcmask 261120
  %v54 = vsel %vm52, %v27, 0
  %v57 = vsel %vm52, %v28, 0
  %59 = vmatprep.subr.bf16.mxu0 0
  %60 = vmatpush1.bf16.msra.mxu0 %v48
  %61 = vmatprep.subr.bf16.mxu0 0
  %62 = vmatpush1.bf16.msra.mxu0 %v49
  %63 = vmatprep.subr.bf16.mxu0 0
  %64 = vmatpush1.bf16.msra.mxu0 0
  %65 = vmatprep.subr.bf16.mxu0 0
  %66 = vmatpush1.bf16.msra.mxu0 0
  %67 = vmatprep.subr.bf16.mxu0 0
  %68 = vmatpush1.bf16.msra.mxu0 0
  %69 = vmatprep.subr.bf16.mxu0 0
  %70 = vmatpush1.bf16.msra.mxu0 0
  %71 = vmatprep.subr.bf16.mxu0 0
  %72 = vmatpush1.bf16.msra.mxu0 0
  %73 = vmatprep.subr.bf16.mxu0 0
  %74 = vmatpush1.bf16.msra.mxu0 0
  %75 = vmatprep.subr.bf16.mxu0 0
  %76 = vmatpush1.bf16.msra.mxu0 0
  %77 = vmatprep.subr.bf16.mxu0 0
  %78 = vmatpush1.bf16.msra.mxu0 0
  %79 = vmatprep.subr.bf16.mxu0 0
  %80 = vmatpush1.bf16.msra.mxu0 0
  %81 = vmatprep.subr.bf16.mxu0 0
  %82 = vmatpush1.bf16.msra.mxu0 0
  %83 = vmatprep.subr.bf16.mxu0 0
  %84 = vmatpush1.bf16.msra.mxu0 0
  %85 = vmatprep.subr.bf16.mxu0 0
  %86 = vmatpush1.bf16.msra.mxu0 0
  %87 = vmatprep.subr.bf16.mxu0 0
  %88 = vmatpush1.bf16.msra.mxu0 0
  %89 = vmatprep.subr.bf16.mxu0 0
  %90 = vmatpush1.bf16.msra.mxu0 0
  %91 = vmatprep.mubr.bf16.mxu0 0
  %92 = vmatmul.mubr.bf16.gmra.mrb[0].mxu0 %v54
  %v93 = vpop.f32.mrb[0].mxu0
  %v94 = vadd.f32 %v38, %v93
  %v95 = vpop.f32.mrb[0].mxu0
  %v96 = vpop.f32.mrb[0].mxu0
  %v97 = vadd.f32 %v38, %v96
  %v98 = vpop.f32.mrb[0].mxu0
  %99 = vmatprep.mubr.bf16.mxu0 0
  %100 = vmatmul.mubr.bf16.gmra.mrb[0].mxu0 %v57
  %v101 = vpop.f32.mrb[0].mxu0
  %v102 = vadd.f32 %v38, %v101
  %v103 = vpop.f32.mrb[0].mxu0
  %v104 = vpop.f32.mrb[0].mxu0
  %v105 = vpop.f32.mrb[0].mxu0
  %106 = vdwg.mxu0
  %v107 = vld [vmem:[%s2] sm:$0xf]
  %v108 = vld [vmem:[%s2 + $0x4] sm:$0xf]
  %v109 = vld [vmem:[%s2 + $0x8] sm:$0xf]
  %v110 = vld [vmem:[%s2 + $0xc] sm:$0xf]
  %v115 = vunpack.c.l.b16 %v107
  %v116 = vunpack.c.l.b16 %v108
  %v117 = vunpack.c.l.b16 %v109
  %v118 = vunpack.c.l.b16 %v110
  %v119 = vpack.c.b16 %v116, %v115
  %v120 = vpack.c.b16 %v118, %v117
  %v124 = vsel %vm52, 0, 0
  %126 = vmatprep.subr.bf16.mxu0 0
  %127 = vmatpush1.bf16.msra.mxu0 %v119
  %128 = vmatprep.subr.bf16.mxu0 0
  %129 = vmatpush1.bf16.msra.mxu0 %v120
  %130 = vmatprep.subr.bf16.mxu0 0
  %131 = vmatpush1.bf16.msra.mxu0 0
  %132 = vmatprep.subr.bf16.mxu0 0
  %133 = vmatpush1.bf16.msra.mxu0 0
  %134 = vmatprep.subr.bf16.mxu0 0
  %135 = vmatpush1.bf16.msra.mxu0 0
  %136 = vmatprep.subr.bf16.mxu0 0
  %137 = vmatpush1.bf16.msra.mxu0 0
  %138 = vmatprep.subr.bf16.mxu0 0
  %139 = vmatpush1.bf16.msra.mxu0 0
  %140 = vmatprep.subr.bf16.mxu0 0
  %141 = vmatpush1.bf16.msra.mxu0 0
  %142 = vmatprep.subr.bf16.mxu0 0
  %143 = vmatpush1.bf16.msra.mxu0 0
  %144 = vmatprep.subr.bf16.mxu0 0
  %145 = vmatpush1.bf16.msra.mxu0 0
  %146 = vmatprep.subr.bf16.mxu0 0
  %147 = vmatpush1.bf16.msra.mxu0 0
  %148 = vmatprep.subr.bf16.mxu0 0
  %149 = vmatpush1.bf16.msra.mxu0 0
  %150 = vmatprep.subr.bf16.mxu0 0
  %151 = vmatpush1.bf16.msra.mxu0 0
  %152 = vmatprep.subr.bf16.mxu0 0
  %153 = vmatpush1.bf16.msra.mxu0 0
  %154 = vmatprep.subr.bf16.mxu0 0
  %155 = vmatpush1.bf16.msra.mxu0 0
  %156 = vmatprep.subr.bf16.mxu0 0
  %157 = vmatpush1.bf16.msra.mxu0 0
  %158 = vmatprep.mubr.bf16.mxu0 0
  %159 = vmatmul.mubr.bf16.gmra.mrb[0].mxu0 %v124
  %v160 = vpop.f32.mrb[0].mxu0
  %v161 = vadd.f32 0.0, %v160
  %v162 = vpop.f32.mrb[0].mxu0
  %v163 = vpop.f32.mrb[0].mxu0
  %v164 = vpop.f32.mrb[0].mxu0
  %165 = vdwg.mxu0
  %v166 = vadd.f32 %v94, %v161
  %v167 = vxor.u32 %v166, 2147483648
  %v168 = vmul.f32 %v167, 1.442695
  %v169 = vpow.pop %v168
  %v170 = vadd.f32 %v169, 1.0
  %v171 = vrcp.pop %v170
  %v172 = vmul.f32 1.0, %v171
  %v173 = vtanh.pop %v166
  %v174 = vmul.f32 %v172, 0.0
  %176 = vrot.lane.b32.xlu0 %v173, 64
  %v177 = vpop.permute.xlu0 %176
  %v179 = vmul.f32 %v172, %v177
  %181 = vrot.lane.b32.xlu0 %v179, 32
  %v182 = vpop.permute.xlu0 %181
  %v184 = vadd.f32 %v174, %v182
  %v185 = vtanh.pop %v184
  %187 = vrot.lane.b32.xlu0 %v185, 64
  %v188 = vpop.permute.xlu0 %187
  %v190 = vmul.f32 %v172, %v188
  %192 = vrot.lane.b32.xlu0 %v190, 32
  %v193 = vpop.permute.xlu0 %192
  %vm195 = vcmask 254976
  %196 = vst.msk [vmem:[#allocation2] sm:$0x3] %vm195, %v193
  %v197 = vpack.c.bf16 %v190, %v190
  %199 = vrot.lane.b32.xlu0 %v197, 32
  %v200 = vpop.permute.xlu0 %199
  %v202 = vsel %vm52, %v200, 0
  %204 = vmatprep.subr.bf16.mxu0 0
  %205 = vmatpush1.bf16.msra.mxu0 %v119
  %206 = vmatprep.subr.bf16.mxu0 0
  %207 = vmatpush1.bf16.msra.mxu0 %v120
  %208 = vmatprep.subr.bf16.mxu0 0
  %209 = vmatpush1.bf16.msra.mxu0 0
  %210 = vmatprep.subr.bf16.mxu0 0
  %211 = vmatpush1.bf16.msra.mxu0 0
  %212 = vmatprep.subr.bf16.mxu0 0
  %213 = vmatpush1.bf16.msra.mxu0 0
  %214 = vmatprep.subr.bf16.mxu0 0
  %215 = vmatpush1.bf16.msra.mxu0 0
  %216 = vmatprep.subr.bf16.mxu0 0
  %217 = vmatpush1.bf16.msra.mxu0 0
  %218 = vmatprep.subr.bf16.mxu0 0
  %219 = vmatpush1.bf16.msra.mxu0 0
  %220 = vmatprep.subr.bf16.mxu0 0
  %221 = vmatpush1.bf16.msra.mxu0 0
  %222 = vmatprep.subr.bf16.mxu0 0
  %223 = vmatpush1.bf16.msra.mxu0 0
  %224 = vmatprep.subr.bf16.mxu0 0
  %225 = vmatpush1.bf16.msra.mxu0 0
  %226 = vmatprep.subr.bf16.mxu0 0
  %227 = vmatpush1.bf16.msra.mxu0 0
  %228 = vmatprep.subr.bf16.mxu0 0
  %229 = vmatpush1.bf16.msra.mxu0 0
  %230 = vmatprep.subr.bf16.mxu0 0
  %231 = vmatpush1.bf16.msra.mxu0 0
  %232 = vmatprep.subr.bf16.mxu0 0
  %233 = vmatpush1.bf16.msra.mxu0 0
  %234 = vmatprep.subr.bf16.mxu0 0
  %235 = vmatpush1.bf16.msra.mxu0 0
  %236 = vmatprep.mubr.bf16.mxu0 0
  %237 = vmatmul.mubr.bf16.gmra.mrb[0].mxu0 %v202
  %v238 = vpop.f32.mrb[0].mxu0
  %v239 = vadd.f32 0.0, %v238
  %v240 = vpop.f32.mrb[0].mxu0
  %v241 = vpop.f32.mrb[0].mxu0
  %v242 = vpop.f32.mrb[0].mxu0
  %243 = vdwg.mxu0
  %v245 = vrot.slane %v239, 6
  %v247 = vadd.f32 %v94, %v245
  %v248 = vxor.u32 %v247, 2147483648
  %v249 = vmul.f32 %v248, 1.442695
  %v250 = vpow.pop %v249
  %v251 = vadd.f32 %v250, 1.0
  %v252 = vrcp.pop %v251
  %v253 = vmul.f32 1.0, %v252
  %v254 = vtanh.pop %v247
  %v256 = vrot.slane %v184, 6
  %v258 = vmul.f32 %v253, %v256
  %260 = vrot.lane.b32.xlu0 %v254, 64
  %v261 = vpop.permute.xlu0 %260
  %v263 = vmul.f32 %v253, %v261
  %265 = vrot.lane.b32.xlu0 %v263, 32
  %v266 = vpop.permute.xlu0 %265
  %v268 = vadd.f32 %v258, %v266
  %v269 = vtanh.pop %v268
  %271 = vrot.lane.b32.xlu0 %v269, 64
  %v272 = vpop.permute.xlu0 %271
  %v274 = vmul.f32 %v253, %v272
  %276 = vrot.lane.b32.xlu0 %v274, 32
  %v277 = vpop.permute.xlu0 %276
  %vm279 = vcmask 257026
  %280 = vst.msk [vmem:[#allocation2] sm:$0xc] %vm279, %v277
  %v281 = vpack.c.bf16 %v274, %v274
  %v283 = vrot.slane %v281, 1
  %284 = vrot.lane.b32.xlu0 %v283, 32
  %v285 = vpop.permute.xlu0 %284
  %v287 = vsel %vm52, %v285, 0
  %289 = vmatprep.subr.bf16.mxu0 0
  %290 = vmatpush1.bf16.msra.mxu0 %v119
  %291 = vmatprep.subr.bf16.mxu0 0
  %292 = vmatpush1.bf16.msra.mxu0 %v120
  %293 = vmatprep.subr.bf16.mxu0 0
  %294 = vmatpush1.bf16.msra.mxu0 0
  %295 = vmatprep.subr.bf16.mxu0 0
  %296 = vmatpush1.bf16.msra.mxu0 0
  %297 = vmatprep.subr.bf16.mxu0 0
  %298 = vmatpush1.bf16.msra.mxu0 0
  %299 = vmatprep.subr.bf16.mxu0 0
  %300 = vmatpush1.bf16.msra.mxu0 0
  %301 = vmatprep.subr.bf16.mxu0 0
  %302 = vmatpush1.bf16.msra.mxu0 0
  %303 = vmatprep.subr.bf16.mxu0 0
  %304 = vmatpush1.bf16.msra.mxu0 0
  %305 = vmatprep.subr.bf16.mxu0 0
  %306 = vmatpush1.bf16.msra.mxu0 0
  %307 = vmatprep.subr.bf16.mxu0 0
  %308 = vmatpush1.bf16.msra.mxu0 0
  %309 = vmatprep.subr.bf16.mxu0 0
  %310 = vmatpush1.bf16.msra.mxu0 0
  %311 = vmatprep.subr.bf16.mxu0 0
  %312 = vmatpush1.bf16.msra.mxu0 0
  %313 = vmatprep.subr.bf16.mxu0 0
  %314 = vmatpush1.bf16.msra.mxu0 0
  %315 = vmatprep.subr.bf16.mxu0 0
  %316 = vmatpush1.bf16.msra.mxu0 0
  %317 = vmatprep.subr.bf16.mxu0 0
  %318 = vmatpush1.bf16.msra.mxu0 0
  %319 = vmatprep.subr.bf16.mxu0 0
  %320 = vmatpush1.bf16.msra.mxu0 0
  %321 = vmatprep.mubr.bf16.mxu0 0
  %322 = vmatmul.mubr.bf16.gmra.mrb[0].mxu0 %v287
  %v323 = vpop.f32.mrb[0].mxu0
  %v324 = vadd.f32 0.0, %v323
  %v325 = vpop.f32.mrb[0].mxu0
  %v326 = vpop.f32.mrb[0].mxu0
  %v327 = vpop.f32.mrb[0].mxu0
  %328 = vdwg.mxu0
  %v330 = vrot.slane %v324, 4
  %v332 = vadd.f32 %v94, %v330
  %v333 = vxor.u32 %v332, 2147483648
  %v334 = vmul.f32 %v333, 1.442695
  %v335 = vpow.pop %v334
  %v336 = vadd.f32 %v335, 1.0
  %v337 = vrcp.pop %v336
  %v338 = vmul.f32 1.0, %v337
  %v339 = vtanh.pop %v332
  %v341 = vrot.slane %v268, 6
  %v343 = vmul.f32 %v338, %v341
  %345 = vrot.lane.b32.xlu0 %v339, 64
  %v346 = vpop.permute.xlu0 %345
  %v348 = vmul.f32 %v338, %v346
  %350 = vrot.lane.b32.xlu0 %v348, 32
  %v351 = vpop.permute.xlu0 %350
  %v353 = vadd.f32 %v343, %v351
  %v354 = vtanh.pop %v353
  %356 = vrot.lane.b32.xlu0 %v354, 64
  %v357 = vpop.permute.xlu0 %356
  %v359 = vmul.f32 %v338, %v357
  %361 = vrot.lane.b32.xlu0 %v359, 32
  %v362 = vpop.permute.xlu0 %361
  %vm364 = vcmask 259076
  %365 = vst.msk [vmem:[#allocation2] sm:$0x30] %vm364, %v362
  %v366 = vpack.c.bf16 %v359, %v359
  %v368 = vrot.slane %v366, 2
  %369 = vrot.lane.b32.xlu0 %v368, 32
  %v370 = vpop.permute.xlu0 %369
  %v372 = vsel %vm52, %v370, 0
  %374 = vmatprep.subr.bf16.mxu0 0
  %375 = vmatpush1.bf16.msra.mxu0 %v119
  %376 = vmatprep.subr.bf16.mxu0 0
  %377 = vmatpush1.bf16.msra.mxu0 %v120
  %378 = vmatprep.subr.bf16.mxu0 0
  %379 = vmatpush1.bf16.msra.mxu0 0
  %380 = vmatprep.subr.bf16.mxu0 0
  %381 = vmatpush1.bf16.msra.mxu0 0
  %382 = vmatprep.subr.bf16.mxu0 0
  %383 = vmatpush1.bf16.msra.mxu0 0
  %384 = vmatprep.subr.bf16.mxu0 0
  %385 = vmatpush1.bf16.msra.mxu0 0
  %386 = vmatprep.subr.bf16.mxu0 0
  %387 = vmatpush1.bf16.msra.mxu0 0
  %388 = vmatprep.subr.bf16.mxu0 0
  %389 = vmatpush1.bf16.msra.mxu0 0
  %390 = vmatprep.subr.bf16.mxu0 0
  %391 = vmatpush1.bf16.msra.mxu0 0
  %392 = vmatprep.subr.bf16.mxu0 0
  %393 = vmatpush1.bf16.msra.mxu0 0
  %394 = vmatprep.subr.bf16.mxu0 0
  %395 = vmatpush1.bf16.msra.mxu0 0
  %396 = vmatprep.subr.bf16.mxu0 0
  %397 = vmatpush1.bf16.msra.mxu0 0
  %398 = vmatprep.subr.bf16.mxu0 0
  %399 = vmatpush1.bf16.msra.mxu0 0
  %400 = vmatprep.subr.bf16.mxu0 0
  %401 = vmatpush1.bf16.msra.mxu0 0
  %402 = vmatprep.subr.bf16.mxu0 0
  %403 = vmatpush1.bf16.msra.mxu0 0
  %404 = vmatprep.subr.bf16.mxu0 0
  %405 = vmatpush1.bf16.msra.mxu0 0
  %406 = vmatprep.mubr.bf16.mxu0 0
  %407 = vmatmul.mubr.bf16.gmra.mrb[0].mxu0 %v372
  %v408 = vpop.f32.mrb[0].mxu0
  %v409 = vadd.f32 0.0, %v408
  %v410 = vpop.f32.mrb[0].mxu0
  %v411 = vpop.f32.mrb[0].mxu0
  %v412 = vpop.f32.mrb[0].mxu0
  %413 = vdwg.mxu0
  %v415 = vrot.slane %v409, 2
  %v417 = vadd.f32 %v94, %v415
  %v418 = vxor.u32 %v417, 2147483648
  %v419 = vmul.f32 %v418, 1.442695
  %v420 = vpow.pop %v419
  %v421 = vadd.f32 %v420, 1.0
  %v422 = vrcp.pop %v421
  %v423 = vmul.f32 1.0, %v422
  %v424 = vtanh.pop %v417
  %v426 = vrot.slane %v353, 6
  %v428 = vmul.f32 %v423, %v426
  %430 = vrot.lane.b32.xlu0 %v424, 64
  %v431 = vpop.permute.xlu0 %430
  %v433 = vmul.f32 %v423, %v431
  %435 = vrot.lane.b32.xlu0 %v433, 32
  %v436 = vpop.permute.xlu0 %435
  %v438 = vadd.f32 %v428, %v436
  %v439 = vtanh.pop %v438
  %441 = vrot.lane.b32.xlu0 %v439, 64
  %v442 = vpop.permute.xlu0 %441
  %v444 = vmul.f32 %v423, %v442
  %446 = vrot.lane.b32.xlu0 %v444, 32
  %v447 = vpop.permute.xlu0 %446
  %vm449 = vcmask 261126
  %450 = vst.msk [vmem:[#allocation2] sm:$0xc0] %vm449, %v447
  %v451 = vpack.c.bf16 %v444, %v444
  %v453 = vrot.slane %v451, 3
  %454 = vrot.lane.b32.xlu0 %v453, 32
  %v455 = vpop.permute.xlu0 %454
  %v457 = vsel %vm52, %v455, 0
  %459 = vmatprep.subr.bf16.mxu0 0
  %460 = vmatpush1.bf16.msra.mxu0 %v119
  %461 = vmatprep.subr.bf16.mxu0 0
  %462 = vmatpush1.bf16.msra.mxu0 %v120
  %463 = vmatprep.subr.bf16.mxu0 0
  %464 = vmatpush1.bf16.msra.mxu0 0
  %465 = vmatprep.subr.bf16.mxu0 0
  %466 = vmatpush1.bf16.msra.mxu0 0
  %467 = vmatprep.subr.bf16.mxu0 0
  %468 = vmatpush1.bf16.msra.mxu0 0
  %469 = vmatprep.subr.bf16.mxu0 0
  %470 = vmatpush1.bf16.msra.mxu0 0
  %471 = vmatprep.subr.bf16.mxu0 0
  %472 = vmatpush1.bf16.msra.mxu0 0
  %473 = vmatprep.subr.bf16.mxu0 0
  %474 = vmatpush1.bf16.msra.mxu0 0
  %475 = vmatprep.subr.bf16.mxu0 0
  %476 = vmatpush1.bf16.msra.mxu0 0
  %477 = vmatprep.subr.bf16.mxu0 0
  %478 = vmatpush1.bf16.msra.mxu0 0
  %479 = vmatprep.subr.bf16.mxu0 0
  %480 = vmatpush1.bf16.msra.mxu0 0
  %481 = vmatprep.subr.bf16.mxu0 0
  %482 = vmatpush1.bf16.msra.mxu0 0
  %483 = vmatprep.subr.bf16.mxu0 0
  %484 = vmatpush1.bf16.msra.mxu0 0
  %485 = vmatprep.subr.bf16.mxu0 0
  %486 = vmatpush1.bf16.msra.mxu0 0
  %487 = vmatprep.subr.bf16.mxu0 0
  %488 = vmatpush1.bf16.msra.mxu0 0
  %489 = vmatprep.subr.bf16.mxu0 0
  %490 = vmatpush1.bf16.msra.mxu0 0
  %491 = vmatprep.mubr.bf16.mxu0 0
  %492 = vmatmul.mubr.bf16.gmra.mrb[0].mxu0 %v457
  %v493 = vpop.f32.mrb[0].mxu0
  %v494 = vadd.f32 0.0, %v493
  %v495 = vpop.f32.mrb[0].mxu0
  %v496 = vpop.f32.mrb[0].mxu0
  %v497 = vpop.f32.mrb[0].mxu0
  %498 = vdwg.mxu0
  %v499 = vadd.f32 %v97, %v494
  %v500 = vxor.u32 %v499, 2147483648
  %v501 = vmul.f32 %v500, 1.442695
  %v502 = vpow.pop %v501
  %v503 = vadd.f32 %v502, 1.0
  %v504 = vrcp.pop %v503
  %v505 = vmul.f32 1.0, %v504
  %v506 = vtanh.pop %v499
  %v508 = vrot.slane %v438, 6
  %v510 = vmul.f32 %v505, %v508
  %512 = vrot.lane.b32.xlu0 %v506, 64
  %v513 = vpop.permute.xlu0 %512
  %v515 = vmul.f32 %v505, %v513
  %517 = vrot.lane.b32.xlu0 %v515, 32
  %v518 = vpop.permute.xlu0 %517
  %v520 = vadd.f32 %v510, %v518
  %v521 = vtanh.pop %v520
  %523 = vrot.lane.b32.xlu0 %v521, 64
  %v524 = vpop.permute.xlu0 %523
  %v526 = vmul.f32 %v505, %v524
  %528 = vrot.lane.b32.xlu0 %v526, 32
  %v529 = vpop.permute.xlu0 %528
  %531 = vst.msk [vmem:[#allocation2 + $0x8] sm:$0x3] %vm195, %v529
  %v532 = vpack.c.bf16 %v526, %v526
  %534 = vrot.lane.b32.xlu0 %v532, 32
  %v535 = vpop.permute.xlu0 %534
  %v537 = vsel %vm52, %v535, 0
  %539 = vmatprep.subr.bf16.mxu0 0
  %540 = vmatpush1.bf16.msra.mxu0 %v119
  %541 = vmatprep.subr.bf16.mxu0 0
  %542 = vmatpush1.bf16.msra.mxu0 %v120
  %543 = vmatprep.subr.bf16.mxu0 0
  %544 = vmatpush1.bf16.msra.mxu0 0
  %545 = vmatprep.subr.bf16.mxu0 0
  %546 = vmatpush1.bf16.msra.mxu0 0
  %547 = vmatprep.subr.bf16.mxu0 0
  %548 = vmatpush1.bf16.msra.mxu0 0
  %549 = vmatprep.subr.bf16.mxu0 0
  %550 = vmatpush1.bf16.msra.mxu0 0
  %551 = vmatprep.subr.bf16.mxu0 0
  %552 = vmatpush1.bf16.msra.mxu0 0
  %553 = vmatprep.subr.bf16.mxu0 0
  %554 = vmatpush1.bf16.msra.mxu0 0
  %555 = vmatprep.subr.bf16.mxu0 0
  %556 = vmatpush1.bf16.msra.mxu0 0
  %557 = vmatprep.subr.bf16.mxu0 0
  %558 = vmatpush1.bf16.msra.mxu0 0
  %559 = vmatprep.subr.bf16.mxu0 0
  %560 = vmatpush1.bf16.msra.mxu0 0
  %561 = vmatprep.subr.bf16.mxu0 0
  %562 = vmatpush1.bf16.msra.mxu0 0
  %563 = vmatprep.subr.bf16.mxu0 0
  %564 = vmatpush1.bf16.msra.mxu0 0
  %565 = vmatprep.subr.bf16.mxu0 0
  %566 = vmatpush1.bf16.msra.mxu0 0
  %567 = vmatprep.subr.bf16.mxu0 0
  %568 = vmatpush1.bf16.msra.mxu0 0
  %569 = vmatprep.subr.bf16.mxu0 0
  %570 = vmatpush1.bf16.msra.mxu0 0
  %571 = vmatprep.mubr.bf16.mxu0 0
  %572 = vmatmul.mubr.bf16.gmra.mrb[0].mxu0 %v537
  %v573 = vpop.f32.mrb[0].mxu0
  %v574 = vadd.f32 0.0, %v573
  %v575 = vpop.f32.mrb[0].mxu0
  %v576 = vpop.f32.mrb[0].mxu0
  %v577 = vpop.f32.mrb[0].mxu0
  %578 = vdwg.mxu0
  %v580 = vrot.slane %v574, 6
  %v582 = vadd.f32 %v97, %v580
  %v583 = vxor.u32 %v582, 2147483648
  %v584 = vmul.f32 %v583, 1.442695
  %v585 = vpow.pop %v584
  %v586 = vadd.f32 %v585, 1.0
  %v587 = vrcp.pop %v586
  %v588 = vmul.f32 1.0, %v587
  %v589 = vtanh.pop %v582
  %v591 = vrot.slane %v520, 6
  %v593 = vmul.f32 %v588, %v591
  %595 = vrot.lane.b32.xlu0 %v589, 64
  %v596 = vpop.permute.xlu0 %595
  %v598 = vmul.f32 %v588, %v596
  %600 = vrot.lane.b32.xlu0 %v598, 32
  %v601 = vpop.permute.xlu0 %600
  %v603 = vadd.f32 %v593, %v601
  %v604 = vtanh.pop %v603
  %606 = vrot.lane.b32.xlu0 %v604, 64
  %v607 = vpop.permute.xlu0 %606
  %v609 = vmul.f32 %v588, %v607
  %611 = vrot.lane.b32.xlu0 %v609, 32
  %v612 = vpop.permute.xlu0 %611
  %614 = vst.msk [vmem:[#allocation2 + $0x8] sm:$0xc] %vm279, %v612
  %v615 = vpack.c.bf16 %v609, %v609
  %v617 = vrot.slane %v615, 1
  %618 = vrot.lane.b32.xlu0 %v617, 32
  %v619 = vpop.permute.xlu0 %618
  %v621 = vsel %vm52, %v619, 0
  %623 = vmatprep.subr.bf16.mxu0 0
  %624 = vmatpush1.bf16.msra.mxu0 %v119
  %625 = vmatprep.subr.bf16.mxu0 0
  %626 = vmatpush1.bf16.msra.mxu0 %v120
  %627 = vmatprep.subr.bf16.mxu0 0
  %628 = vmatpush1.bf16.msra.mxu0 0
  %629 = vmatprep.subr.bf16.mxu0 0
  %630 = vmatpush1.bf16.msra.mxu0 0
  %631 = vmatprep.subr.bf16.mxu0 0
  %632 = vmatpush1.bf16.msra.mxu0 0
  %633 = vmatprep.subr.bf16.mxu0 0
  %634 = vmatpush1.bf16.msra.mxu0 0
  %635 = vmatprep.subr.bf16.mxu0 0
  %636 = vmatpush1.bf16.msra.mxu0 0
  %637 = vmatprep.subr.bf16.mxu0 0
  %638 = vmatpush1.bf16.msra.mxu0 0
  %639 = vmatprep.subr.bf16.mxu0 0
  %640 = vmatpush1.bf16.msra.mxu0 0
  %641 = vmatprep.subr.bf16.mxu0 0
  %642 = vmatpush1.bf16.msra.mxu0 0
  %643 = vmatprep.subr.bf16.mxu0 0
  %644 = vmatpush1.bf16.msra.mxu0 0
  %645 = vmatprep.subr.bf16.mxu0 0
  %646 = vmatpush1.bf16.msra.mxu0 0
  %647 = vmatprep.subr.bf16.mxu0 0
  %648 = vmatpush1.bf16.msra.mxu0 0
  %649 = vmatprep.subr.bf16.mxu0 0
  %650 = vmatpush1.bf16.msra.mxu0 0
  %651 = vmatprep.subr.bf16.mxu0 0
  %652 = vmatpush1.bf16.msra.mxu0 0
  %653 = vmatprep.subr.bf16.mxu0 0
  %654 = vmatpush1.bf16.msra.mxu0 0
  %655 = vmatprep.mubr.bf16.mxu0 0
  %656 = vmatmul.mubr.bf16.gmra.mrb[0].mxu0 %v621
  %v657 = vpop.f32.mrb[0].mxu0
  %v658 = vadd.f32 0.0, %v657
  %v659 = vpop.f32.mrb[0].mxu0
  %v660 = vpop.f32.mrb[0].mxu0
  %v661 = vpop.f32.mrb[0].mxu0
  %662 = vdwg.mxu0
  %v664 = vrot.slane %v658, 4
  %v666 = vadd.f32 %v97, %v664
  %v667 = vxor.u32 %v666, 2147483648
  %v668 = vmul.f32 %v667, 1.442695
  %v669 = vpow.pop %v668
  %v670 = vadd.f32 %v669, 1.0
  %v671 = vrcp.pop %v670
  %v672 = vmul.f32 1.0, %v671
  %v673 = vtanh.pop %v666
  %v675 = vrot.slane %v603, 6
  %v677 = vmul.f32 %v672, %v675
  %679 = vrot.lane.b32.xlu0 %v673, 64
  %v680 = vpop.permute.xlu0 %679
  %v682 = vmul.f32 %v672, %v680
  %684 = vrot.lane.b32.xlu0 %v682, 32
  %v685 = vpop.permute.xlu0 %684
  %v687 = vadd.f32 %v677, %v685
  %v688 = vtanh.pop %v687
  %690 = vrot.lane.b32.xlu0 %v688, 64
  %v691 = vpop.permute.xlu0 %690
  %v693 = vmul.f32 %v672, %v691
  %695 = vrot.lane.b32.xlu0 %v693, 32
  %v696 = vpop.permute.xlu0 %695
  %698 = vst.msk [vmem:[#allocation2 + $0x8] sm:$0x30] %vm364, %v696
  %v699 = vpack.c.bf16 %v693, %v693
  %v701 = vrot.slane %v699, 2
  %702 = vrot.lane.b32.xlu0 %v701, 32
  %v703 = vpop.permute.xlu0 %702
  %v705 = vsel %vm52, %v703, 0
  %707 = vmatprep.subr.bf16.mxu0 0
  %708 = vmatpush1.bf16.msra.mxu0 %v119
  %709 = vmatprep.subr.bf16.mxu0 0
  %710 = vmatpush1.bf16.msra.mxu0 %v120
  %711 = vmatprep.subr.bf16.mxu0 0
  %712 = vmatpush1.bf16.msra.mxu0 0
  %713 = vmatprep.subr.bf16.mxu0 0
  %714 = vmatpush1.bf16.msra.mxu0 0
  %715 = vmatprep.subr.bf16.mxu0 0
  %716 = vmatpush1.bf16.msra.mxu0 0
  %717 = vmatprep.subr.bf16.mxu0 0
  %718 = vmatpush1.bf16.msra.mxu0 0
  %719 = vmatprep.subr.bf16.mxu0 0
  %720 = vmatpush1.bf16.msra.mxu0 0
  %721 = vmatprep.subr.bf16.mxu0 0
  %722 = vmatpush1.bf16.msra.mxu0 0
  %723 = vmatprep.subr.bf16.mxu0 0
  %724 = vmatpush1.bf16.msra.mxu0 0
  %725 = vmatprep.subr.bf16.mxu0 0
  %726 = vmatpush1.bf16.msra.mxu0 0
  %727 = vmatprep.subr.bf16.mxu0 0
  %728 = vmatpush1.bf16.msra.mxu0 0
  %729 = vmatprep.subr.bf16.mxu0 0
  %730 = vmatpush1.bf16.msra.mxu0 0
  %731 = vmatprep.subr.bf16.mxu0 0
  %732 = vmatpush1.bf16.msra.mxu0 0
  %733 = vmatprep.subr.bf16.mxu0 0
  %734 = vmatpush1.bf16.msra.mxu0 0
  %735 = vmatprep.subr.bf16.mxu0 0
  %736 = vmatpush1.bf16.msra.mxu0 0
  %737 = vmatprep.subr.bf16.mxu0 0
  %738 = vmatpush1.bf16.msra.mxu0 0
  %739 = vmatprep.mubr.bf16.mxu0 0
  %740 = vmatmul.mubr.bf16.gmra.mrb[0].mxu0 %v705
  %v741 = vpop.f32.mrb[0].mxu0
  %v742 = vadd.f32 0.0, %v741
  %v743 = vpop.f32.mrb[0].mxu0
  %v744 = vpop.f32.mrb[0].mxu0
  %v745 = vpop.f32.mrb[0].mxu0
  %746 = vdwg.mxu0
  %v748 = vrot.slane %v742, 2
  %v750 = vadd.f32 %v97, %v748
  %v751 = vxor.u32 %v750, 2147483648
  %v752 = vmul.f32 %v751, 1.442695
  %v753 = vpow.pop %v752
  %v754 = vadd.f32 %v753, 1.0
  %v755 = vrcp.pop %v754
  %v756 = vmul.f32 1.0, %v755
  %v757 = vtanh.pop %v750
  %v759 = vrot.slane %v687, 6
  %v761 = vmul.f32 %v756, %v759
  %763 = vrot.lane.b32.xlu0 %v757, 64
  %v764 = vpop.permute.xlu0 %763
  %v766 = vmul.f32 %v756, %v764
  %768 = vrot.lane.b32.xlu0 %v766, 32
  %v769 = vpop.permute.xlu0 %768
  %v771 = vadd.f32 %v761, %v769
  %v772 = vtanh.pop %v771
  %774 = vrot.lane.b32.xlu0 %v772, 64
  %v775 = vpop.permute.xlu0 %774
  %v777 = vmul.f32 %v756, %v775
  %779 = vrot.lane.b32.xlu0 %v777, 32
  %v780 = vpop.permute.xlu0 %779
  %782 = vst.msk [vmem:[#allocation2 + $0x8] sm:$0xc0] %vm449, %v780
  %v783 = vpack.c.bf16 %v777, %v777
  %v785 = vrot.slane %v783, 3
  %786 = vrot.lane.b32.xlu0 %v785, 32
  %v787 = vpop.permute.xlu0 %786
  %v789 = vsel %vm52, %v787, 0
  %791 = vmatprep.subr.bf16.mxu0 0
  %792 = vmatpush1.bf16.msra.mxu0 %v119
  %793 = vmatprep.subr.bf16.mxu0 0
  %794 = vmatpush1.bf16.msra.mxu0 %v120
  %795 = vmatprep.subr.bf16.mxu0 0
  %796 = vmatpush1.bf16.msra.mxu0 0
  %797 = vmatprep.subr.bf16.mxu0 0
  %798 = vmatpush1.bf16.msra.mxu0 0
  %799 = vmatprep.subr.bf16.mxu0 0
  %800 = vmatpush1.bf16.msra.mxu0 0
  %801 = vmatprep.subr.bf16.mxu0 0
  %802 = vmatpush1.bf16.msra.mxu0 0
  %803 = vmatprep.subr.bf16.mxu0 0
  %804 = vmatpush1.bf16.msra.mxu0 0
  %805 = vmatprep.subr.bf16.mxu0 0
  %806 = vmatpush1.bf16.msra.mxu0 0
  %807 = vmatprep.subr.bf16.mxu0 0
  %808 = vmatpush1.bf16.msra.mxu0 0
  %809 = vmatprep.subr.bf16.mxu0 0
  %810 = vmatpush1.bf16.msra.mxu0 0
  %811 = vmatprep.subr.bf16.mxu0 0
  %812 = vmatpush1.bf16.msra.mxu0 0
  %813 = vmatprep.subr.bf16.mxu0 0
  %814 = vmatpush1.bf16.msra.mxu0 0
  %815 = vmatprep.subr.bf16.mxu0 0
  %816 = vmatpush1.bf16.msra.mxu0 0
  %817 = vmatprep.subr.bf16.mxu0 0
  %818 = vmatpush1.bf16.msra.mxu0 0
  %819 = vmatprep.subr.bf16.mxu0 0
  %820 = vmatpush1.bf16.msra.mxu0 0
  %821 = vmatprep.subr.bf16.mxu0 0
  %822 = vmatpush1.bf16.msra.mxu0 0
  %823 = vmatprep.mubr.bf16.mxu0 0
  %824 = vmatmul.mubr.bf16.gmra.mrb[0].mxu0 %v789
  %v825 = vpop.f32.mrb[0].mxu0
  %v826 = vadd.f32 0.0, %v825
  %v827 = vpop.f32.mrb[0].mxu0
  %v828 = vpop.f32.mrb[0].mxu0
  %v829 = vpop.f32.mrb[0].mxu0
  %830 = vdwg.mxu0
  %v831 = vadd.f32 %v102, %v826
  %v832 = vxor.u32 %v831, 2147483648
  %v833 = vmul.f32 %v832, 1.442695
  %v834 = vpow.pop %v833
  %v835 = vadd.f32 %v834, 1.0
  %v836 = vrcp.pop %v835
  %v837 = vmul.f32 1.0, %v836
  %v838 = vtanh.pop %v831
  %v840 = vrot.slane %v771, 6
  %v842 = vmul.f32 %v837, %v840
  %844 = vrot.lane.b32.xlu0 %v838, 64
  %v845 = vpop.permute.xlu0 %844
  %v847 = vmul.f32 %v837, %v845
  %849 = vrot.lane.b32.xlu0 %v847, 32
  %v850 = vpop.permute.xlu0 %849
  %v852 = vadd.f32 %v842, %v850
  %v853 = vtanh.pop %v852
  %855 = vrot.lane.b32.xlu0 %v853, 64
  %v856 = vpop.permute.xlu0 %855
  %v858 = vmul.f32 %v837, %v856
  %860 = vrot.lane.b32.xlu0 %v858, 32
  %v861 = vpop.permute.xlu0 %860
  %863 = vst.msk [vmem:[#allocation2 + $0x10] sm:$0x3] %vm195, %v861
  %v864 = vld [vmem:[#allocation2] sm:$0xff]
  %v865 = vld [vmem:[#allocation2 + $0x8] sm:$0xff]
  %v866 = vld [vmem:[#allocation2 + $0x10] sm:$0x3]
  %v867 = vpack.c.bf16 %v865, %v864
  %v868 = vpack.c.bf16 %v866, %v866
  %v869 = vld [vmem:[%s4] sm:$0xf]
  %v870 = vld [vmem:[%s4 + $0x4] sm:$0xf]
  %v871 = vld [vmem:[%s4 + $0x8] sm:$0xf]
  %v872 = vld [vmem:[%s4 + $0xc] sm:$0xf]
  %v873 = vld [vmem:[%s5] sm:$0x1]
  %v875 = vlaneseq
  %v876 = vshrl.u32 %v875, 7
  %v877 = vsub.s32 0, %v876
  %v878 = vrot.slane %v873, %v877
  %v884 = vunpack.c.l.b16 %v869
  %v885 = vunpack.c.l.b16 %v870
  %v886 = vunpack.c.l.b16 %v871
  %v887 = vunpack.c.l.b16 %v872
  %v888 = vpack.c.b16 %v885, %v884
  %v889 = vpack.c.b16 %v887, %v886
  %v893 = vsel %vm52, %v867, 0
  %v896 = vsel %vm52, %v868, 0
  %898 = vmatprep.subr.bf16.mxu0 0
  %899 = vmatpush1.bf16.msra.mxu0 %v888
  %900 = vmatprep.subr.bf16.mxu0 0
  %901 = vmatpush1.bf16.msra.mxu0 %v889
  %902 = vmatprep.subr.bf16.mxu0 0
  %903 = vmatpush1.bf16.msra.mxu0 0
  %904 = vmatprep.subr.bf16.mxu0 0
  %905 = vmatpush1.bf16.msra.mxu0 0
  %906 = vmatprep.subr.bf16.mxu0 0
  %907 = vmatpush1.bf16.msra.mxu0 0
  %908 = vmatprep.subr.bf16.mxu0 0
  %909 = vmatpush1.bf16.msra.mxu0 0
  %910 = vmatprep.subr.bf16.mxu0 0
  %911 = vmatpush1.bf16.msra.mxu0 0
  %912 = vmatprep.subr.bf16.mxu0 0
  %913 = vmatpush1.bf16.msra.mxu0 0
  %914 = vmatprep.subr.bf16.mxu0 0
  %915 = vmatpush1.bf16.msra.mxu0 0
  %916 = vmatprep.subr.bf16.mxu0 0
  %917 = vmatpush1.bf16.msra.mxu0 0
  %918 = vmatprep.subr.bf16.mxu0 0
  %919 = vmatpush1.bf16.msra.mxu0 0
  %920 = vmatprep.subr.bf16.mxu0 0
  %921 = vmatpush1.bf16.msra.mxu0 0
  %922 = vmatprep.subr.bf16.mxu0 0
  %923 = vmatpush1.bf16.msra.mxu0 0
  %924 = vmatprep.subr.bf16.mxu0 0
  %925 = vmatpush1.bf16.msra.mxu0 0
  %926 = vmatprep.subr.bf16.mxu0 0
  %927 = vmatpush1.bf16.msra.mxu0 0
  %928 = vmatprep.subr.bf16.mxu0 0
  %929 = vmatpush1.bf16.msra.mxu0 0
  %930 = vmatprep.mubr.bf16.mxu0 0
  %931 = vmatmul.mubr.bf16.gmra.mrb[0].mxu0 %v893
  %v932 = vpop.f32.mrb[0].mxu0
  %v933 = vadd.f32 %v878, %v932
  %v934 = vpop.f32.mrb[0].mxu0
  %v935 = vpop.f32.mrb[0].mxu0
  %v936 = vadd.f32 %v878, %v935
  %v937 = vpop.f32.mrb[0].mxu0
  %938 = vmatprep.mubr.bf16.mxu0 0
  %939 = vmatmul.mubr.bf16.gmra.mrb[0].mxu0 %v896
  %v940 = vpop.f32.mrb[0].mxu0
  %v941 = vadd.f32 %v878, %v940
  %v942 = vpop.f32.mrb[0].mxu0
  %v943 = vpop.f32.mrb[0].mxu0
  %v944 = vpop.f32.mrb[0].mxu0
  %945 = vdwg.mxu0
  %946 = vst [vmem:[%s6] sm:$0xff] %v933
  %947 = vst [vmem:[%s6 + $0x8] sm:$0xff] %v936
  %948 = vst [vmem:[%s6 + $0x10] sm:$0x3] %v941
  // Predicated region
  $region26: #{gradcam_forward.3} parent=0 // pred_check
    _
  $region27: #{gradcam_forward.3} parent=0 // pred_check_branch
    %950 = sbr.rel (0) target = $region29
  $region28: #{gradcam_forward.3} parent=0 // pred_region
    _
  $region29: #{gradcam_forward.3} parent=0 // pred_fallthru
    _
  // Predicated region
  $region30: #{gradcam_forward.3} parent=0 // pred_check
    _
  $region31: #{gradcam_forward.3} parent=0 // pred_check_branch
    %952 = sbr.rel (0) target = $region33
  $region32: #{gradcam_forward.3} parent=0 // pred_region
    _
  $region33: #{gradcam_forward.3} parent=0 // pred_fallthru
    _

</llo_original>
